<compile_context>
chip_gen: v7x
topology: tpu7x:2x2x1
jax: 0.10.0
libtpu: 0.0.40
codegen_flags: <defaults>
</compile_context>

<pallas_src>
import jax
import jax.numpy as jnp
from jax.experimental import pallas as pl
from jax.experimental.pallas import tpu as pltpu


_LANE_DENSE_SUPPORTED = None  # resolved lazily the first time a kernel is built


def _round_up(value, multiple):
    return ((value + multiple - 1) // multiple) * multiple


def _chip_config():
    """Returns (block_b, vmem_limit_bytes, min_tiles) tuned per TPU generation."""
    vmem = 64 * 1024 * 1024
    try:
        info = pltpu.get_tpu_info()
        vmem = int(getattr(info, "vmem_capacity_bytes", vmem))
    except Exception:
        pass
    if vmem >= 100 * 1024 * 1024:
        # v5e / v6e: 128 MiB VMEM, single TensorCore -> big tiles, no forced split.
        return 8192, 64 * 1024 * 1024, 1
    # v7x (64 MiB / TC, 2 TCs) or unknown: smaller tiles, ensure >= 2 grid steps.
    return 4096, 32 * 1024 * 1024, 2


def _choose_tiles(batch, block_b, min_tiles):
    """Pick a 128-row-aligned batch tile; guarantee >= min_tiles grid steps."""
    rows = max(128, _round_up(batch, 128))
    tb = min(max(128, (block_b // 128) * 128), rows)
    if min_tiles > 1 and rows >= min_tiles * 128:
        tb = min(tb, _round_up(-(-rows // min_tiles), 128))
    padded = _round_up(rows, tb)
    return tb, padded, padded // tb


def _make_kernel(lane_dense):
    def kernel(x_ref, w1_ref, b1_ref, w2_ref, b2_ref, w3_ref, b3_ref,
               w4_ref, b4_ref, o_ref):
        bf = jnp.bfloat16
        f32 = jnp.float32

        x = x_ref[...].astype(bf)                                     # (TB, 16)

        h1 = jnp.dot(x, w1_ref[...], preferred_element_type=f32) + b1_ref[...]
        h1 = jnp.maximum(h1, 0.0).astype(bf)                          # (TB, 64)

        h2 = jnp.dot(h1, w2_ref[...], preferred_element_type=f32) + b2_ref[...]
        h2 = jnp.maximum(h2, 0.0).astype(bf)                          # (TB, 128)

        h3 = jnp.dot(h2, w3_ref[...], preferred_element_type=f32) + b3_ref[...]
        h3 = jnp.maximum(h3, 0.0)                                     # f32 (TB, 128)

        # Final (128 -> 1) layer: VPU multiply + XLU lane reduce (no N=1 matmul).
        w4 = w4_ref[...]                                              # (1, 128) f32
        if lane_dense:
            tb = h3.shape[0]
            # Leading-dim split is layout preserving (free); the lane reduce then
            # lands the per-row logits directly in a lane-dense (TB//128, 128)
            # slab -> full unmasked vector stores instead of TB/8 masked ones.
            h3r = h3.reshape(tb // 128, 128, 128)
            z = jnp.sum(h3r * w4[None], axis=-1) + b4_ref[...]        # (TB//128, 128)
        else:
            z = jnp.sum(h3 * w4, axis=-1, keepdims=True) + b4_ref[...]  # (TB, 1)

        # Exact sigmoid (EUP exp + divide); keeps outputs strictly in [0, 1].
        o_ref[...] = 1.0 / (1.0 + jnp.exp(-z))

    return kernel


def classificator_forward(x, params, *, block_b=None):
    """x: (B, 16) float32. params: list of (W, b) with W shaped (in, out)."""
    global _LANE_DENSE_SUPPORTED

    (w1, b1), (w2, b2), (w3, b3), (w4, b4) = params
    B = x.shape[0]
    x = x.astype(jnp.float32)

    cfg_block_b, vmem_limit, min_tiles = _chip_config()
    if block_b is None:
        block_b = cfg_block_b

    # Pre-cast MXU weights to bf16 once on the host; biases stay fp32.
    bf = jnp.bfloat16
    w1b, w2b, w3b = w1.astype(bf), w2.astype(bf), w3.astype(bf)
    b1r = jnp.reshape(b1, (1, -1)).astype(jnp.float32)
    b2r = jnp.reshape(b2, (1, -1)).astype(jnp.float32)
    b3r = jnp.reshape(b3, (1, -1)).astype(jnp.float32)
    w4_row = jnp.reshape(w4, (1, -1)).astype(jnp.float32)             # (1, 128)
    b4_2d = jnp.reshape(b4, (1, 1)).astype(jnp.float32)               # (1, 1)

    tb, padded_b, num_tiles = _choose_tiles(B, block_b, min_tiles)
    if padded_b != B:
        x = jnp.pad(x, ((0, padded_b - B), (0, 0)))

    args = (x, w1b, b1r, w2b, b2r, w3b, b3r, w4_row, b4_2d)

    def pinned(a):
        # Full-array block + constant index_map -> stays resident in VMEM.
        return pl.BlockSpec(a.shape, lambda i: (0, 0))

    flops = 2 * padded_b * (16 * 64 + 64 * 128 + 128 * 128 + 128)
    bytes_accessed = (
        padded_b * 16 * 4 + padded_b * 4
        + sum(int(a.size) * a.dtype.itemsize
              for a in (w1b, b1r, w2b, b2r, w3b, b3r, w4_row, b4_2d)))
    cost = pl.CostEstimate(flops=flops, transcendentals=2 * padded_b,
                           bytes_accessed=bytes_accessed)

    def build(lane_dense):
        if lane_dense:
            out_shape = jax.ShapeDtypeStruct((padded_b // 128, 128), jnp.float32)
            out_spec = pl.BlockSpec((tb // 128, 128), lambda i: (i, 0))
        else:
            out_shape = jax.ShapeDtypeStruct((padded_b, 1), jnp.float32)
            out_spec = pl.BlockSpec((tb, 1), lambda i: (i, 0))
        return pl.pallas_call(
            _make_kernel(lane_dense),
            out_shape=out_shape,
            grid=(num_tiles,),
            in_specs=[
                pl.BlockSpec((tb, 16), lambda i: (i, 0)),   # x streams per tile
                pinned(w1b), pinned(b1r),
                pinned(w2b), pinned(b2r),
                pinned(w3b), pinned(b3r),
                pinned(w4_row), pinned(b4_2d),
            ],
            out_specs=out_spec,
            compiler_params=pltpu.CompilerParams(
                dimension_semantics=("parallel",),     # shard tiles over v7x's 2 TCs
                vmem_limit_bytes=vmem_limit),
            cost_estimate=cost,
        )

    if _LANE_DENSE_SUPPORTED is None:
        try:
            out = jax.block_until_ready(build(True)(*args))
            _LANE_DENSE_SUPPORTED = True
            return out.reshape(padded_b, 1)[:B]
        except Exception:
            # Lane-dense relayout not supported on this toolchain; fall back.
            _LANE_DENSE_SUPPORTED = False
    if _LANE_DENSE_SUPPORTED:
        return build(True)(*args).reshape(padded_b, 1)[:B]
    return build(False)(*args)[:B]


def init_params(key):
    """PyTorch-Linear-style init (uniform +/- 1/sqrt(fan_in)).
    Weights stored transposed: shape (in_features, out_features)."""
    dims = [(16, 64), (64, 128), (128, 128), (128, 1)]
    params = []
    for (fan_in, fan_out) in dims:
        key, kw, kb = jax.random.split(key, 3)
        bound = 1.0 / jnp.sqrt(jnp.float32(fan_in))
        w = jax.random.uniform(kw, (fan_in, fan_out), jnp.float32, -bound, bound)
        b = jax.random.uniform(kb, (1, fan_out), jnp.float32, -bound, bound)
        params.append((w, b))
    return params


def reference_forward_fp32(x, params):
    """Exact fp32 semantics of the original PyTorch module."""
    h = x
    for i, (w, b) in enumerate(params):
        h = h @ w + b
        if i < 3:
            h = jnp.maximum(h, 0.0)
    return jax.nn.sigmoid(h)


def reference_forward_matched(x, params):
    """Same math as the kernel: bf16 MXU inputs, fp32 accumulation/elementwise."""
    bf = jnp.bfloat16
    (w1, b1), (w2, b2), (w3, b3), (w4, b4) = params
    h = jnp.maximum(jnp.dot(x.astype(bf), w1.astype(bf),
                            preferred_element_type=jnp.float32) + b1, 0.0)
    h = jnp.maximum(jnp.dot(h.astype(bf), w2.astype(bf),
                            preferred_element_type=jnp.float32) + b2, 0.0)
    h = jnp.maximum(jnp.dot(h.astype(bf), w3.astype(bf),
                            preferred_element_type=jnp.float32) + b3, 0.0)
    z = jnp.sum(h * w4.reshape(1, -1), axis=-1, keepdims=True) + b4
    return jax.nn.sigmoid(z)


if __name__ == "__main__":
    key = jax.random.PRNGKey(0)
    key, kx = jax.random.split(key)
    params = init_params(key)

    # Small batches: tile-aligned, pad/slice path, and a multi-tile case.
    for B in (8, 37, 300):
        x = jax.random.normal(jax.random.fold_in(kx, B), (B, 16), jnp.float32)

        out = jax.block_until_ready(classificator_forward(x, params))
        assert out.shape == (B, 1), out.shape
        assert bool(jnp.all((out >= 0.0) & (out <= 1.0)))

        ref_matched = reference_forward_matched(x, params)
        ref_fp32 = reference_forward_fp32(x, params)
        assert jnp.allclose(out, ref_matched, atol=2e-3, rtol=0.0), \
            float(jnp.max(jnp.abs(out - ref_matched)))
        assert jnp.allclose(out, ref_fp32, atol=3e-2, rtol=0.0), \
            float(jnp.max(jnp.abs(out - ref_fp32)))

    print("KERNEL_OK")
</pallas_src>

<mosaic_0001>
module attributes {stable_mosaic.version = 11 : i64} {
  func.func @kernel(%arg0: i32, %arg1: memref<128x16xf32, #tpu.memory_space<vmem>>, %arg2: memref<16x64xbf16, #tpu.memory_space<vmem>>, %arg3: memref<1x64xf32, #tpu.memory_space<vmem>>, %arg4: memref<64x128xbf16, #tpu.memory_space<vmem>>, %arg5: memref<1x128xf32, #tpu.memory_space<vmem>>, %arg6: memref<128x128xbf16, #tpu.memory_space<vmem>>, %arg7: memref<1x128xf32, #tpu.memory_space<vmem>>, %arg8: memref<1x128xf32, #tpu.memory_space<vmem>>, %arg9: memref<1x1xf32, #tpu.memory_space<vmem>>, %arg10: memref<1x128xf32, #tpu.memory_space<vmem>>) attributes {dimension_semantics = [#tpu.dimension_semantics<parallel>], iteration_bounds = array<i64: 1>, scalar_prefetch = 0 : i64, scratch_operands = 0 : i64, tpu.core_type = #tpu.core_type<tc>, window_params = [{transform_indices = @transform_0, window_bounds = array<i64: 128, 16>}, {pipeline_mode = #tpu.pipeline_mode<synchronous>, transform_indices = @transform_1, window_bounds = array<i64: 16, 64>}, {pipeline_mode = #tpu.pipeline_mode<synchronous>, transform_indices = @transform_2, window_bounds = array<i64: 1, 64>}, {pipeline_mode = #tpu.pipeline_mode<synchronous>, transform_indices = @transform_3, window_bounds = array<i64: 64, 128>}, {pipeline_mode = #tpu.pipeline_mode<synchronous>, transform_indices = @transform_4, window_bounds = array<i64: 1, 128>}, {pipeline_mode = #tpu.pipeline_mode<synchronous>, transform_indices = @transform_5, window_bounds = array<i64: 128, 128>}, {pipeline_mode = #tpu.pipeline_mode<synchronous>, transform_indices = @transform_6, window_bounds = array<i64: 1, 128>}, {pipeline_mode = #tpu.pipeline_mode<synchronous>, transform_indices = @transform_7, window_bounds = array<i64: 1, 128>}, {pipeline_mode = #tpu.pipeline_mode<synchronous>, transform_indices = @transform_8, window_bounds = array<i64: 1, 1>}, {transform_indices = @transform_9, window_bounds = array<i64: 1, 128>}]} {
    %c0 = arith.constant 0 : index
    %c0_0 = arith.constant 0 : index
    %0 = vector.load %arg1[%c0, %c0_0] : memref<128x16xf32, #tpu.memory_space<vmem>>, vector<128x16xf32>
    %1 = arith.truncf %0 : vector<128x16xf32> to vector<128x16xbf16>
    %c0_1 = arith.constant 0 : index
    %c0_2 = arith.constant 0 : index
    %2 = vector.load %arg2[%c0_1, %c0_2] : memref<16x64xbf16, #tpu.memory_space<vmem>>, vector<16x64xbf16>
    %cst = arith.constant dense<0.000000e+00> : vector<128x64xf32>
    %3 = tpu.matmul %1, %2, %cst {dimension_numbers = #tpu.dot_dimension_numbers<[1], [0], [0], [1], [0, 0, 1, 1], [], []>} : vector<128x16xbf16>, vector<16x64xbf16>, vector<128x64xf32> -> vector<128x64xf32>
    %c0_3 = arith.constant 0 : index
    %c0_4 = arith.constant 0 : index
    %4 = vector.load %arg3[%c0_3, %c0_4] : memref<1x64xf32, #tpu.memory_space<vmem>>, vector<1x64xf32>
    %5 = vector.broadcast %4 : vector<1x64xf32> to vector<128x64xf32>
    %6 = arith.addf %3, %5 : vector<128x64xf32>
    %cst_5 = arith.constant 0.000000e+00 : f32
    %7 = vector.broadcast %cst_5 : f32 to vector<128x64xf32>
    %8 = arith.maximumf %6, %7 : vector<128x64xf32>
    %9 = arith.truncf %8 : vector<128x64xf32> to vector<128x64xbf16>
    %c0_6 = arith.constant 0 : index
    %c0_7 = arith.constant 0 : index
    %10 = vector.load %arg4[%c0_6, %c0_7] : memref<64x128xbf16, #tpu.memory_space<vmem>>, vector<64x128xbf16>
    %cst_8 = arith.constant dense<0.000000e+00> : vector<128x128xf32>
    %11 = tpu.matmul %9, %10, %cst_8 {dimension_numbers = #tpu.dot_dimension_numbers<[1], [0], [0], [1], [0, 0, 1, 1], [], []>} : vector<128x64xbf16>, vector<64x128xbf16>, vector<128x128xf32> -> vector<128x128xf32>
    %c0_9 = arith.constant 0 : index
    %c0_10 = arith.constant 0 : index
    %12 = vector.load %arg5[%c0_9, %c0_10] : memref<1x128xf32, #tpu.memory_space<vmem>>, vector<1x128xf32>
    %13 = vector.broadcast %12 : vector<1x128xf32> to vector<128x128xf32>
    %14 = arith.addf %11, %13 : vector<128x128xf32>
    %cst_11 = arith.constant 0.000000e+00 : f32
    %15 = vector.broadcast %cst_11 : f32 to vector<128x128xf32>
    %16 = arith.maximumf %14, %15 : vector<128x128xf32>
    %17 = arith.truncf %16 : vector<128x128xf32> to vector<128x128xbf16>
    %c0_12 = arith.constant 0 : index
    %c0_13 = arith.constant 0 : index
    %18 = vector.load %arg6[%c0_12, %c0_13] : memref<128x128xbf16, #tpu.memory_space<vmem>>, vector<128x128xbf16>
    %cst_14 = arith.constant dense<0.000000e+00> : vector<128x128xf32>
    %19 = tpu.matmul %17, %18, %cst_14 {dimension_numbers = #tpu.dot_dimension_numbers<[1], [0], [0], [1], [0, 0, 1, 1], [], []>} : vector<128x128xbf16>, vector<128x128xbf16>, vector<128x128xf32> -> vector<128x128xf32>
    %c0_15 = arith.constant 0 : index
    %c0_16 = arith.constant 0 : index
    %20 = vector.load %arg7[%c0_15, %c0_16] : memref<1x128xf32, #tpu.memory_space<vmem>>, vector<1x128xf32>
    %21 = vector.broadcast %20 : vector<1x128xf32> to vector<128x128xf32>
    %22 = arith.addf %19, %21 : vector<128x128xf32>
    %cst_17 = arith.constant 0.000000e+00 : f32
    %23 = vector.broadcast %cst_17 : f32 to vector<128x128xf32>
    %24 = arith.maximumf %22, %23 : vector<128x128xf32>
    %c0_18 = arith.constant 0 : index
    %c0_19 = arith.constant 0 : index
    %25 = vector.load %arg8[%c0_18, %c0_19] : memref<1x128xf32, #tpu.memory_space<vmem>>, vector<1x128xf32>
    %26 = vector.shape_cast %24 : vector<128x128xf32> to vector<1x128x128xf32>
    %27 = vector.shape_cast %25 : vector<1x128xf32> to vector<1x1x128xf32>
    %28 = vector.broadcast %27 : vector<1x1x128xf32> to vector<1x128x128xf32>
    %29 = arith.mulf %26, %28 : vector<1x128x128xf32>
    %cst_20 = arith.constant dense<0.000000e+00> : vector<1x128xf32>
    %30 = vector.multi_reduction <add>, %29, %cst_20 [2] : vector<1x128x128xf32> to vector<1x128xf32>
    %c0_21 = arith.constant 0 : index
    %c0_22 = arith.constant 0 : index
    %31 = vector.load %arg9[%c0_21, %c0_22] : memref<1x1xf32, #tpu.memory_space<vmem>>, vector<1x1xf32>
    %32 = vector.broadcast %31 : vector<1x1xf32> to vector<1x128xf32>
    %33 = arith.addf %30, %32 : vector<1x128xf32>
    %cst_23 = arith.constant 0.000000e+00 : f32
    %34 = vector.broadcast %cst_23 : f32 to vector<1x128xf32>
    %35 = arith.subf %34, %33 : vector<1x128xf32>
    %36 = math.exp %35 : vector<1x128xf32>
    %cst_24 = arith.constant 1.000000e+00 : f32
    %37 = vector.broadcast %cst_24 : f32 to vector<1x128xf32>
    %38 = arith.addf %37, %36 : vector<1x128xf32>
    %cst_25 = arith.constant 1.000000e+00 : f32
    %39 = vector.broadcast %cst_25 : f32 to vector<1x128xf32>
    %40 = arith.divf %39, %38 : vector<1x128xf32>
    %c0_26 = arith.constant 0 : index
    %c0_27 = arith.constant 0 : index
    %41 = vector.load %arg10[%c0_26, %c0_27] : memref<1x128xf32, #tpu.memory_space<vmem>>, vector<1x128xf32>
    tpu.vector_store %arg10[%c0_26, %c0_27], %40 {strides = array<i32>} : memref<1x128xf32, #tpu.memory_space<vmem>>, vector<1x128xf32>,
    return
  }
  func.func @transform_0(%arg0: i32) -> (i32, i32) {
    %c0_i32 = arith.constant 0 : i32
    %c0_i32_0 = arith.constant 0 : i32
    return %arg0, %c0_i32 : i32, i32
  }
  func.func @transform_1(%arg0: i32) -> (i32, i32) {
    %c0_i32 = arith.constant 0 : i32
    %c0_i32_0 = arith.constant 0 : i32
    %c0_i32_1 = arith.constant 0 : i32
    return %c0_i32, %c0_i32_0 : i32, i32
  }
  func.func @transform_2(%arg0: i32) -> (i32, i32) {
    %c0_i32 = arith.constant 0 : i32
    %c0_i32_0 = arith.constant 0 : i32
    %c0_i32_1 = arith.constant 0 : i32
    return %c0_i32, %c0_i32_0 : i32, i32
  }
  func.func @transform_3(%arg0: i32) -> (i32, i32) {
    %c0_i32 = arith.constant 0 : i32
    %c0_i32_0 = arith.constant 0 : i32
    %c0_i32_1 = arith.constant 0 : i32
    return %c0_i32, %c0_i32_0 : i32, i32
  }
  func.func @transform_4(%arg0: i32) -> (i32, i32) {
    %c0_i32 = arith.constant 0 : i32
    %c0_i32_0 = arith.constant 0 : i32
    %c0_i32_1 = arith.constant 0 : i32
    return %c0_i32, %c0_i32_0 : i32, i32
  }
  func.func @transform_5(%arg0: i32) -> (i32, i32) {
    %c0_i32 = arith.constant 0 : i32
    %c0_i32_0 = arith.constant 0 : i32
    %c0_i32_1 = arith.constant 0 : i32
    return %c0_i32, %c0_i32_0 : i32, i32
  }
  func.func @transform_6(%arg0: i32) -> (i32, i32) {
    %c0_i32 = arith.constant 0 : i32
    %c0_i32_0 = arith.constant 0 : i32
    %c0_i32_1 = arith.constant 0 : i32
    return %c0_i32, %c0_i32_0 : i32, i32
  }
  func.func @transform_7(%arg0: i32) -> (i32, i32) {
    %c0_i32 = arith.constant 0 : i32
    %c0_i32_0 = arith.constant 0 : i32
    %c0_i32_1 = arith.constant 0 : i32
    return %c0_i32, %c0_i32_0 : i32, i32
  }
  func.func @transform_8(%arg0: i32) -> (i32, i32) {
    %c0_i32 = arith.constant 0 : i32
    %c0_i32_0 = arith.constant 0 : i32
    %c0_i32_1 = arith.constant 0 : i32
    return %c0_i32, %c0_i32_0 : i32, i32
  }
  func.func @transform_9(%arg0: i32) -> (i32, i32) {
    %c0_i32 = arith.constant 0 : i32
    %c0_i32_0 = arith.constant 0 : i32
    return %arg0, %c0_i32 : i32, i32
  }
}

module attributes {stable_mosaic.version = 11 : i64} {
  func.func @kernel(%arg0: i32, %arg1: memref<128x16xf32, #tpu.memory_space<vmem>>, %arg2: memref<16x64xbf16, #tpu.memory_space<vmem>>, %arg3: memref<1x64xf32, #tpu.memory_space<vmem>>, %arg4: memref<64x128xbf16, #tpu.memory_space<vmem>>, %arg5: memref<1x128xf32, #tpu.memory_space<vmem>>, %arg6: memref<128x128xbf16, #tpu.memory_space<vmem>>, %arg7: memref<1x128xf32, #tpu.memory_space<vmem>>, %arg8: memref<1x128xf32, #tpu.memory_space<vmem>>, %arg9: memref<1x1xf32, #tpu.memory_space<vmem>>, %arg10: memref<128x1xf32, #tpu.memory_space<vmem>>) attributes {dimension_semantics = [#tpu.dimension_semantics<parallel>], iteration_bounds = array<i64: 1>, scalar_prefetch = 0 : i64, scratch_operands = 0 : i64, tpu.core_type = #tpu.core_type<tc>, window_params = [{transform_indices = @transform_0, window_bounds = array<i64: 128, 16>}, {pipeline_mode = #tpu.pipeline_mode<synchronous>, transform_indices = @transform_1, window_bounds = array<i64: 16, 64>}, {pipeline_mode = #tpu.pipeline_mode<synchronous>, transform_indices = @transform_2, window_bounds = array<i64: 1, 64>}, {pipeline_mode = #tpu.pipeline_mode<synchronous>, transform_indices = @transform_3, window_bounds = array<i64: 64, 128>}, {pipeline_mode = #tpu.pipeline_mode<synchronous>, transform_indices = @transform_4, window_bounds = array<i64: 1, 128>}, {pipeline_mode = #tpu.pipeline_mode<synchronous>, transform_indices = @transform_5, window_bounds = array<i64: 128, 128>}, {pipeline_mode = #tpu.pipeline_mode<synchronous>, transform_indices = @transform_6, window_bounds = array<i64: 1, 128>}, {pipeline_mode = #tpu.pipeline_mode<synchronous>, transform_indices = @transform_7, window_bounds = array<i64: 1, 128>}, {pipeline_mode = #tpu.pipeline_mode<synchronous>, transform_indices = @transform_8, window_bounds = array<i64: 1, 1>}, {transform_indices = @transform_9, window_bounds = array<i64: 128, 1>}]} {
    %c0 = arith.constant 0 : index
    %c0_0 = arith.constant 0 : index
    %0 = vector.load %arg1[%c0, %c0_0] : memref<128x16xf32, #tpu.memory_space<vmem>>, vector<128x16xf32>
    %1 = arith.truncf %0 : vector<128x16xf32> to vector<128x16xbf16>
    %c0_1 = arith.constant 0 : index
    %c0_2 = arith.constant 0 : index
    %2 = vector.load %arg2[%c0_1, %c0_2] : memref<16x64xbf16, #tpu.memory_space<vmem>>, vector<16x64xbf16>
    %cst = arith.constant dense<0.000000e+00> : vector<128x64xf32>
    %3 = tpu.matmul %1, %2, %cst {dimension_numbers = #tpu.dot_dimension_numbers<[1], [0], [0], [1], [0, 0, 1, 1], [], []>} : vector<128x16xbf16>, vector<16x64xbf16>, vector<128x64xf32> -> vector<128x64xf32>
    %c0_3 = arith.constant 0 : index
    %c0_4 = arith.constant 0 : index
    %4 = vector.load %arg3[%c0_3, %c0_4] : memref<1x64xf32, #tpu.memory_space<vmem>>, vector<1x64xf32>
    %5 = vector.broadcast %4 : vector<1x64xf32> to vector<128x64xf32>
    %6 = arith.addf %3, %5 : vector<128x64xf32>
    %cst_5 = arith.constant 0.000000e+00 : f32
    %7 = vector.broadcast %cst_5 : f32 to vector<128x64xf32>
    %8 = arith.maximumf %6, %7 : vector<128x64xf32>
    %9 = arith.truncf %8 : vector<128x64xf32> to vector<128x64xbf16>
    %c0_6 = arith.constant 0 : index
    %c0_7 = arith.constant 0 : index
    %10 = vector.load %arg4[%c0_6, %c0_7] : memref<64x128xbf16, #tpu.memory_space<vmem>>, vector<64x128xbf16>
    %cst_8 = arith.constant dense<0.000000e+00> : vector<128x128xf32>
    %11 = tpu.matmul %9, %10, %cst_8 {dimension_numbers = #tpu.dot_dimension_numbers<[1], [0], [0], [1], [0, 0, 1, 1], [], []>} : vector<128x64xbf16>, vector<64x128xbf16>, vector<128x128xf32> -> vector<128x128xf32>
    %c0_9 = arith.constant 0 : index
    %c0_10 = arith.constant 0 : index
    %12 = vector.load %arg5[%c0_9, %c0_10] : memref<1x128xf32, #tpu.memory_space<vmem>>, vector<1x128xf32>
    %13 = vector.broadcast %12 : vector<1x128xf32> to vector<128x128xf32>
    %14 = arith.addf %11, %13 : vector<128x128xf32>
    %cst_11 = arith.constant 0.000000e+00 : f32
    %15 = vector.broadcast %cst_11 : f32 to vector<128x128xf32>
    %16 = arith.maximumf %14, %15 : vector<128x128xf32>
    %17 = arith.truncf %16 : vector<128x128xf32> to vector<128x128xbf16>
    %c0_12 = arith.constant 0 : index
    %c0_13 = arith.constant 0 : index
    %18 = vector.load %arg6[%c0_12, %c0_13] : memref<128x128xbf16, #tpu.memory_space<vmem>>, vector<128x128xbf16>
    %cst_14 = arith.constant dense<0.000000e+00> : vector<128x128xf32>
    %19 = tpu.matmul %17, %18, %cst_14 {dimension_numbers = #tpu.dot_dimension_numbers<[1], [0], [0], [1], [0, 0, 1, 1], [], []>} : vector<128x128xbf16>, vector<128x128xbf16>, vector<128x128xf32> -> vector<128x128xf32>
    %c0_15 = arith.constant 0 : index
    %c0_16 = arith.constant 0 : index
    %20 = vector.load %arg7[%c0_15, %c0_16] : memref<1x128xf32, #tpu.memory_space<vmem>>, vector<1x128xf32>
    %21 = vector.broadcast %20 : vector<1x128xf32> to vector<128x128xf32>
    %22 = arith.addf %19, %21 : vector<128x128xf32>
    %cst_17 = arith.constant 0.000000e+00 : f32
    %23 = vector.broadcast %cst_17 : f32 to vector<128x128xf32>
    %24 = arith.maximumf %22, %23 : vector<128x128xf32>
    %c0_18 = arith.constant 0 : index
    %c0_19 = arith.constant 0 : index
    %25 = vector.load %arg8[%c0_18, %c0_19] : memref<1x128xf32, #tpu.memory_space<vmem>>, vector<1x128xf32>
    %26 = vector.broadcast %25 : vector<1x128xf32> to vector<128x128xf32>
    %27 = arith.mulf %24, %26 : vector<128x128xf32>
    %cst_20 = arith.constant dense<0.000000e+00> : vector<128xf32>
    %28 = vector.multi_reduction <add>, %27, %cst_20 [1] : vector<128x128xf32> to vector<128xf32>
    %29 = vector.shape_cast %28 : vector<128xf32> to vector<128x1xf32>
    %c0_21 = arith.constant 0 : index
    %c0_22 = arith.constant 0 : index
    %30 = vector.load %arg9[%c0_21, %c0_22] : memref<1x1xf32, #tpu.memory_space<vmem>>, vector<1x1xf32>
    %31 = vector.broadcast %30 : vector<1x1xf32> to vector<128x1xf32>
    %32 = arith.addf %29, %31 : vector<128x1xf32>
    %cst_23 = arith.constant 0.000000e+00 : f32
    %33 = vector.broadcast %cst_23 : f32 to vector<128x1xf32>
    %34 = arith.subf %33, %32 : vector<128x1xf32>
    %35 = math.exp %34 : vector<128x1xf32>
    %cst_24 = arith.constant 1.000000e+00 : f32
    %36 = vector.broadcast %cst_24 : f32 to vector<128x1xf32>
    %37 = arith.addf %36, %35 : vector<128x1xf32>
    %cst_25 = arith.constant 1.000000e+00 : f32
    %38 = vector.broadcast %cst_25 : f32 to vector<128x1xf32>
    %39 = arith.divf %38, %37 : vector<128x1xf32>
    %c0_26 = arith.constant 0 : index
    %c0_27 = arith.constant 0 : index
    %40 = vector.load %arg10[%c0_26, %c0_27] : memref<128x1xf32, #tpu.memory_space<vmem>>, vector<128x1xf32>
    tpu.vector_store %arg10[%c0_26, %c0_27], %39 {strides = array<i32>} : memref<128x1xf32, #tpu.memory_space<vmem>>, vector<128x1xf32>,
    return
  }
  func.func @transform_0(%arg0: i32) -> (i32, i32) {
    %c0_i32 = arith.constant 0 : i32
    %c0_i32_0 = arith.constant 0 : i32
    return %arg0, %c0_i32 : i32, i32
  }
  func.func @transform_1(%arg0: i32) -> (i32, i32) {
    %c0_i32 = arith.constant 0 : i32
    %c0_i32_0 = arith.constant 0 : i32
    %c0_i32_1 = arith.constant 0 : i32
    return %c0_i32, %c0_i32_0 : i32, i32
  }
  func.func @transform_2(%arg0: i32) -> (i32, i32) {
    %c0_i32 = arith.constant 0 : i32
    %c0_i32_0 = arith.constant 0 : i32
    %c0_i32_1 = arith.constant 0 : i32
    return %c0_i32, %c0_i32_0 : i32, i32
  }
  func.func @transform_3(%arg0: i32) -> (i32, i32) {
    %c0_i32 = arith.constant 0 : i32
    %c0_i32_0 = arith.constant 0 : i32
    %c0_i32_1 = arith.constant 0 : i32
    return %c0_i32, %c0_i32_0 : i32, i32
  }
  func.func @transform_4(%arg0: i32) -> (i32, i32) {
    %c0_i32 = arith.constant 0 : i32
    %c0_i32_0 = arith.constant 0 : i32
    %c0_i32_1 = arith.constant 0 : i32
    return %c0_i32, %c0_i32_0 : i32, i32
  }
  func.func @transform_5(%arg0: i32) -> (i32, i32) {
    %c0_i32 = arith.constant 0 : i32
    %c0_i32_0 = arith.constant 0 : i32
    %c0_i32_1 = arith.constant 0 : i32
    return %c0_i32, %c0_i32_0 : i32, i32
  }
  func.func @transform_6(%arg0: i32) -> (i32, i32) {
    %c0_i32 = arith.constant 0 : i32
    %c0_i32_0 = arith.constant 0 : i32
    %c0_i32_1 = arith.constant 0 : i32
    return %c0_i32, %c0_i32_0 : i32, i32
  }
  func.func @transform_7(%arg0: i32) -> (i32, i32) {
    %c0_i32 = arith.constant 0 : i32
    %c0_i32_0 = arith.constant 0 : i32
    %c0_i32_1 = arith.constant 0 : i32
    return %c0_i32, %c0_i32_0 : i32, i32
  }
  func.func @transform_8(%arg0: i32) -> (i32, i32) {
    %c0_i32 = arith.constant 0 : i32
    %c0_i32_0 = arith.constant 0 : i32
    %c0_i32_1 = arith.constant 0 : i32
    return %c0_i32, %c0_i32_0 : i32, i32
  }
  func.func @transform_9(%arg0: i32) -> (i32, i32) {
    %c0_i32 = arith.constant 0 : i32
    %c0_i32_0 = arith.constant 0 : i32
    return %arg0, %c0_i32 : i32, i32
  }
}

</mosaic_0001>

<llo_original>
// kernel: tpu_custom_call.1
$region0: #{tpu_custom_call.1}
  #allocation0 [shape = 'u32[]', space=smem, size = 0x4, offset = 0x4, fixed_abs, tag = 'smem constant byte address 0x4 - core index']
  #allocation1 [shape = 'u32[144,128]{1,0:T(1,128)}', space=vmem, size = 0x12000, scoped, tag = 'internal scratch']
  #allocation2 [shape = 'f32[1,1]{1,0:T(1,128)S(1)}', space=vmem, size = 0x200, scoped, tag = 'scoped memory for tpu_custom_call.1']
  %s0 = inlined_call_operand.vmem [shape: f32[128,16], index: 0, kind: input, shape index: {}]
  %s1 = inlined_call_operand.vmem [shape: bf16[16,64], index: 1, kind: input, shape index: {}]
  %s2 = inlined_call_operand.vmem [shape: f32[1,64], index: 2, kind: input, shape index: {}]
  %s3 = inlined_call_operand.vmem [shape: bf16[64,128], index: 3, kind: input, shape index: {}]
  %s4 = inlined_call_operand.vmem [shape: f32[1,128], index: 4, kind: input, shape index: {}]
  %s5 = inlined_call_operand.vmem [shape: bf16[128,128], index: 5, kind: input, shape index: {}]
  %s6 = inlined_call_operand.vmem [shape: f32[1,128], index: 6, kind: input, shape index: {}]
  %s7 = inlined_call_operand.vmem [shape: f32[1,128], index: 7, kind: input, shape index: {}]
  %s8 = inlined_call_operand.<no memory space> [shape: f32[1,1], index: 8, kind: input, shape index: {}]
  %s9 = inlined_call_operand.hbm [shape: f32[1,128], index: 9, kind: output, shape index: {}]
  %s10 = sld [smem:[#allocation0]]
  $region46: #{tpu_custom_call.1} parent=0
    _
  %s12 = ssub.s32 1, %s10
  %s13 = scalar_select 0, %s12, %s10
  %v14 = vstv %s8
  %15 = vst [vmem:[#allocation2] sm:$0x1] %v14
  $region1: #{tpu_custom_call.1} parent=0
    #allocation3 [shape = 'u8[512]{0}', space=vmem, size = 0x400, scoped, tag = 'output window, operand 0, single buffered']
    #allocation4 [shape = 's32[1]{0}', space=sflag, size = 0x4, scoped, tag = 'scoped memory for tpu_custom_call.1']
    %16 = vsyncpa [#allocation4], 0
    // Predicated region
    $region2: #{tpu_custom_call.1} parent=1 // pred_check
      _
    $region3: #{tpu_custom_call.1} parent=1 // pred_check_branch
      %18 = sbr.rel (0) target = $region5
    $region4: #{tpu_custom_call.1} parent=1 // pred_region
      _
    $region5: #{tpu_custom_call.1} parent=1 // pred_fallthru
      _
    // Predicated region
    $region6: #{tpu_custom_call.1} parent=1 // pred_check
      _
    $region7: #{tpu_custom_call.1} parent=1 // pred_check_branch
      %20 = sbr.rel (0) target = $region9
    $region8: #{tpu_custom_call.1} parent=1 // pred_region
      _
    $region9: #{tpu_custom_call.1} parent=1 // pred_fallthru
      _
    // Predicated region
    $region10: #{tpu_custom_call.1} parent=1 // pred_check
      _
    $region11: #{tpu_custom_call.1} parent=1 // pred_check_branch
      %22 = sbr.rel (0) target = $region13
    $region12: #{tpu_custom_call.1} parent=1 // pred_region
      _
    $region13: #{tpu_custom_call.1} parent=1 // pred_fallthru
      _
    // Predicated region
    $region14: #{tpu_custom_call.1} parent=1 // pred_check
      _
    $region15: #{tpu_custom_call.1} parent=1 // pred_check_branch
      %24 = sbr.rel (0) target = $region17
    $region16: #{tpu_custom_call.1} parent=1 // pred_region
      _
    $region17: #{tpu_custom_call.1} parent=1 // pred_fallthru
      _
    // Predicated region
    $region18: #{tpu_custom_call.1} parent=1 // pred_check
      _
    $region19: #{tpu_custom_call.1} parent=1 // pred_check_branch
      %26 = sbr.rel (0) target = $region21
    $region20: #{tpu_custom_call.1} parent=1 // pred_region
      _
    $region21: #{tpu_custom_call.1} parent=1 // pred_fallthru
      _
    // Predicated region
    $region22: #{tpu_custom_call.1} parent=1 // pred_check
      _
    $region23: #{tpu_custom_call.1} parent=1 // pred_check_branch
      %28 = sbr.rel (0) target = $region25
    $region24: #{tpu_custom_call.1} parent=1 // pred_region
      _
    $region25: #{tpu_custom_call.1} parent=1 // pred_fallthru
      _
    // Predicated region
    $region26: #{tpu_custom_call.1} parent=1 // pred_check
      _
    $region27: #{tpu_custom_call.1} parent=1 // pred_check_branch
      %30 = sbr.rel (0) target = $region29
    $region28: #{tpu_custom_call.1} parent=1 // pred_region
      _
    $region29: #{tpu_custom_call.1} parent=1 // pred_fallthru
      _
    // Predicated region
    $region30: #{tpu_custom_call.1} parent=1 // pred_check
      _
    $region31: #{tpu_custom_call.1} parent=1 // pred_check_branch
      %32 = sbr.rel (0) target = $region33
    $region32: #{tpu_custom_call.1} parent=1 // pred_region
      _
    $region33: #{tpu_custom_call.1} parent=1 // pred_fallthru
      _
    // Predicated region
    $region34: #{tpu_custom_call.1} parent=1 // pred_check
      _
    $region35: #{tpu_custom_call.1} parent=1 // pred_check_branch
      %34 = sbr.rel (0) target = $region37
    $region36: #{tpu_custom_call.1} parent=1 // pred_region
      _
    $region37: #{tpu_custom_call.1} parent=1 // pred_fallthru
      _
    %v36 = vld [vmem:[%s0] sm:$0xff]
    %v37 = vld [vmem:[%s0 + $0x8] sm:$0xff]
    %v38 = vld [vmem:[%s0 + $0x10] sm:$0xff]
    %v39 = vld [vmem:[%s0 + $0x18] sm:$0xff]
    %v40 = vld [vmem:[%s0 + $0x20] sm:$0xff]
    %v41 = vld [vmem:[%s0 + $0x28] sm:$0xff]
    %v42 = vld [vmem:[%s0 + $0x30] sm:$0xff]
    %v43 = vld [vmem:[%s0 + $0x38] sm:$0xff]
    %v44 = vld [vmem:[%s0 + $0x40] sm:$0xff]
    %v45 = vld [vmem:[%s0 + $0x48] sm:$0xff]
    %v46 = vld [vmem:[%s0 + $0x50] sm:$0xff]
    %v47 = vld [vmem:[%s0 + $0x58] sm:$0xff]
    %v48 = vld [vmem:[%s0 + $0x60] sm:$0xff]
    %v49 = vld [vmem:[%s0 + $0x68] sm:$0xff]
    %v50 = vld [vmem:[%s0 + $0x70] sm:$0xff]
    %v51 = vld [vmem:[%s0 + $0x78] sm:$0xff]
    %v52 = vpack.c.bf16 %v37, %v36
    %v53 = vpack.c.bf16 %v39, %v38
    %v54 = vpack.c.bf16 %v41, %v40
    %v55 = vpack.c.bf16 %v43, %v42
    %v56 = vpack.c.bf16 %v45, %v44
    %v57 = vpack.c.bf16 %v47, %v46
    %v58 = vpack.c.bf16 %v49, %v48
    %v59 = vpack.c.bf16 %v51, %v50
    %v60 = vld [vmem:[%s1] sm:$0xf]
    %v61 = vld [vmem:[%s1 + $0x4] sm:$0xf]
    %v62 = vld [vmem:[%s2] sm:$0x1]
    %v64 = vlaneseq
    %v65 = vshrl.u32 %v64, 7
    %v66 = vsub.s32 0, %v65
    %v67 = vrot.slane %v62, %v66
    %v71 = vunpack.c.l.b16 %v60
    %v72 = vunpack.c.l.b16 %v61
    %v73 = vpack.c.b16 %v72, %v71
    %vm75 = vcmask 130048
    %v77 = vsel %vm75, %v52, 0
    %v80 = vsel %vm75, %v53, 0
    %v83 = vsel %vm75, %v54, 0
    %v86 = vsel %vm75, %v55, 0
    %v89 = vsel %vm75, %v56, 0
    %v92 = vsel %vm75, %v57, 0
    %v95 = vsel %vm75, %v58, 0
    %v98 = vsel %vm75, %v59, 0
    %100 = vmatprep.subr.bf16.mxu0 0
    %101 = vmatpush1.bf16.msra.mxu0 %v73
    %102 = vmatprep.subr.bf16.mxu0 0
    %103 = vmatpush1.bf16.msra.mxu0 0
    %104 = vmatprep.subr.bf16.mxu0 0
    %105 = vmatpush1.bf16.msra.mxu0 0
    %106 = vmatprep.subr.bf16.mxu0 0
    %107 = vmatpush1.bf16.msra.mxu0 0
    %108 = vmatprep.subr.bf16.mxu0 0
    %109 = vmatpush1.bf16.msra.mxu0 0
    %110 = vmatprep.subr.bf16.mxu0 0
    %111 = vmatpush1.bf16.msra.mxu0 0
    %112 = vmatprep.subr.bf16.mxu0 0
    %113 = vmatpush1.bf16.msra.mxu0 0
    %114 = vmatprep.subr.bf16.mxu0 0
    %115 = vmatpush1.bf16.msra.mxu0 0
    %116 = vmatprep.subr.bf16.mxu0 0
    %117 = vmatpush1.bf16.msra.mxu0 0
    %118 = vmatprep.subr.bf16.mxu0 0
    %119 = vmatpush1.bf16.msra.mxu0 0
    %120 = vmatprep.subr.bf16.mxu0 0
    %121 = vmatpush1.bf16.msra.mxu0 0
    %122 = vmatprep.subr.bf16.mxu0 0
    %123 = vmatpush1.bf16.msra.mxu0 0
    %124 = vmatprep.subr.bf16.mxu0 0
    %125 = vmatpush1.bf16.msra.mxu0 0
    %126 = vmatprep.subr.bf16.mxu0 0
    %127 = vmatpush1.bf16.msra.mxu0 0
    %128 = vmatprep.subr.bf16.mxu0 0
    %129 = vmatpush1.bf16.msra.mxu0 0
    %130 = vmatprep.subr.bf16.mxu0 0
    %131 = vmatpush1.bf16.msra.mxu0 0
    %132 = vmatprep.mubr.bf16.mxu0 0
    %133 = vmatmul.mubr.bf16.gmra.mrb[0].mxu0 %v77
    %v134 = vpop.f32.mrb[0].mxu0
    %v135 = vadd.f32 %v67, %v134
    %v136 = vpop.f32.mrb[0].mxu0
    %v137 = vpop.f32.mrb[0].mxu0
    %v138 = vadd.f32 %v67, %v137
    %v139 = vpop.f32.mrb[0].mxu0
    %140 = vmatprep.mubr.bf16.mxu0 0
    %141 = vmatmul.mubr.bf16.gmra.mrb[0].mxu0 %v80
    %v142 = vpop.f32.mrb[0].mxu0
    %v143 = vadd.f32 %v67, %v142
    %v144 = vpop.f32.mrb[0].mxu0
    %v145 = vpop.f32.mrb[0].mxu0
    %v146 = vadd.f32 %v67, %v145
    %v147 = vpop.f32.mrb[0].mxu0
    %148 = vmatprep.mubr.bf16.mxu0 0
    %149 = vmatmul.mubr.bf16.gmra.mrb[0].mxu0 %v83
    %v150 = vpop.f32.mrb[0].mxu0
    %v151 = vadd.f32 %v67, %v150
    %v152 = vpop.f32.mrb[0].mxu0
    %v153 = vpop.f32.mrb[0].mxu0
    %v154 = vadd.f32 %v67, %v153
    %v155 = vpop.f32.mrb[0].mxu0
    %156 = vmatprep.mubr.bf16.mxu0 0
    %157 = vmatmul.mubr.bf16.gmra.mrb[0].mxu0 %v86
    %v158 = vpop.f32.mrb[0].mxu0
    %v159 = vadd.f32 %v67, %v158
    %v160 = vpop.f32.mrb[0].mxu0
    %v161 = vpop.f32.mrb[0].mxu0
    %v162 = vadd.f32 %v67, %v161
    %v163 = vpop.f32.mrb[0].mxu0
    %164 = vmatprep.mubr.bf16.mxu0 0
    %165 = vmatmul.mubr.bf16.gmra.mrb[0].mxu0 %v89
    %v166 = vpop.f32.mrb[0].mxu0
    %v167 = vadd.f32 %v67, %v166
    %v168 = vpop.f32.mrb[0].mxu0
    %v169 = vpop.f32.mrb[0].mxu0
    %v170 = vadd.f32 %v67, %v169
    %v171 = vpop.f32.mrb[0].mxu0
    %172 = vmatprep.mubr.bf16.mxu0 0
    %173 = vmatmul.mubr.bf16.gmra.mrb[0].mxu0 %v92
    %v174 = vpop.f32.mrb[0].mxu0
    %v175 = vadd.f32 %v67, %v174
    %v176 = vpop.f32.mrb[0].mxu0
    %v177 = vpop.f32.mrb[0].mxu0
    %v178 = vadd.f32 %v67, %v177
    %v179 = vpop.f32.mrb[0].mxu0
    %180 = vmatprep.mubr.bf16.mxu0 0
    %181 = vmatmul.mubr.bf16.gmra.mrb[0].mxu0 %v95
    %v182 = vpop.f32.mrb[0].mxu0
    %v183 = vadd.f32 %v67, %v182
    %v184 = vpop.f32.mrb[0].mxu0
    %v185 = vpop.f32.mrb[0].mxu0
    %v186 = vadd.f32 %v67, %v185
    %v187 = vpop.f32.mrb[0].mxu0
    %188 = vmatprep.mubr.bf16.mxu0 0
    %189 = vmatmul.mubr.bf16.gmra.mrb[0].mxu0 %v98
    %v190 = vpop.f32.mrb[0].mxu0
    %v191 = vadd.f32 %v67, %v190
    %v192 = vpop.f32.mrb[0].mxu0
    %v193 = vpop.f32.mrb[0].mxu0
    %v194 = vadd.f32 %v67, %v193
    %v195 = vpop.f32.mrb[0].mxu0
    %196 = vdwg.mxu0
    %v197 = vmax.f32 %v135, 0.0
    %v198 = vmax.f32 %v138, 0.0
    %v199 = vmax.f32 %v143, 0.0
    %v200 = vmax.f32 %v146, 0.0
    %v201 = vmax.f32 %v151, 0.0
    %v202 = vmax.f32 %v154, 0.0
    %v203 = vmax.f32 %v159, 0.0
    %v204 = vmax.f32 %v162, 0.0
    %v205 = vmax.f32 %v167, 0.0
    %v206 = vmax.f32 %v170, 0.0
    %v207 = vmax.f32 %v175, 0.0
    %v208 = vmax.f32 %v178, 0.0
    %v209 = vmax.f32 %v183, 0.0
    %v210 = vmax.f32 %v186, 0.0
    %v211 = vmax.f32 %v191, 0.0
    %v212 = vmax.f32 %v194, 0.0
    %v213 = vpack.c.bf16 %v198, %v197
    %v214 = vpack.c.bf16 %v200, %v199
    %v215 = vpack.c.bf16 %v202, %v201
    %v216 = vpack.c.bf16 %v204, %v203
    %v217 = vpack.c.bf16 %v206, %v205
    %v218 = vpack.c.bf16 %v208, %v207
    %v219 = vpack.c.bf16 %v210, %v209
    %v220 = vpack.c.bf16 %v212, %v211
    %v221 = vld [vmem:[%s3] sm:$0xf]
    %v222 = vld [vmem:[%s3 + $0x4] sm:$0xf]
    %v223 = vld [vmem:[%s3 + $0x8] sm:$0xf]
    %v224 = vld [vmem:[%s3 + $0xc] sm:$0xf]
    %v225 = vld [vmem:[%s3 + $0x10] sm:$0xf]
    %v226 = vld [vmem:[%s3 + $0x14] sm:$0xf]
    %v227 = vld [vmem:[%s3 + $0x18] sm:$0xf]
    %v228 = vld [vmem:[%s3 + $0x1c] sm:$0xf]
    %v229 = vld [vmem:[%s4] sm:$0x1]
    %v231 = vlaneseq
    %v232 = vshrl.u32 %v231, 7
    %v233 = vsub.s32 0, %v232
    %v234 = vrot.slane %v229, %v233
    %v244 = vunpack.c.l.b16 %v221
    %v245 = vunpack.c.l.b16 %v222
    %v246 = vunpack.c.l.b16 %v223
    %v247 = vunpack.c.l.b16 %v224
    %v248 = vunpack.c.l.b16 %v225
    %v249 = vunpack.c.l.b16 %v226
    %v250 = vunpack.c.l.b16 %v227
    %v251 = vunpack.c.l.b16 %v228
    %v252 = vpack.c.b16 %v245, %v244
    %v253 = vpack.c.b16 %v247, %v246
    %v254 = vpack.c.b16 %v249, %v248
    %v255 = vpack.c.b16 %v251, %v250
    %vm260 = vcmask 523264
    %v262 = vsel %vm260, %v213, 0
    %v265 = vsel %vm260, %v214, 0
    %v268 = vsel %vm260, %v215, 0
    %v271 = vsel %vm260, %v216, 0
    %v274 = vsel %vm260, %v217, 0
    %v277 = vsel %vm260, %v218, 0
    %v280 = vsel %vm260, %v219, 0
    %v283 = vsel %vm260, %v220, 0
    %285 = vmatprep.subr.bf16.mxu0 0
    %286 = vmatpush1.bf16.msra.mxu0 %v252
    %287 = vmatprep.subr.bf16.mxu0 0
    %288 = vmatpush1.bf16.msra.mxu0 %v253
    %289 = vmatprep.subr.bf16.mxu0 0
    %290 = vmatpush1.bf16.msra.mxu0 %v254
    %291 = vmatprep.subr.bf16.mxu0 0
    %292 = vmatpush1.bf16.msra.mxu0 %v255
    %293 = vmatprep.subr.bf16.mxu0 0
    %294 = vmatpush1.bf16.msra.mxu0 0
    %295 = vmatprep.subr.bf16.mxu0 0
    %296 = vmatpush1.bf16.msra.mxu0 0
    %297 = vmatprep.subr.bf16.mxu0 0
    %298 = vmatpush1.bf16.msra.mxu0 0
    %299 = vmatprep.subr.bf16.mxu0 0
    %300 = vmatpush1.bf16.msra.mxu0 0
    %301 = vmatprep.subr.bf16.mxu0 0
    %302 = vmatpush1.bf16.msra.mxu0 0
    %303 = vmatprep.subr.bf16.mxu0 0
    %304 = vmatpush1.bf16.msra.mxu0 0
    %305 = vmatprep.subr.bf16.mxu0 0
    %306 = vmatpush1.bf16.msra.mxu0 0
    %307 = vmatprep.subr.bf16.mxu0 0
    %308 = vmatpush1.bf16.msra.mxu0 0
    %309 = vmatprep.subr.bf16.mxu0 0
    %310 = vmatpush1.bf16.msra.mxu0 0
    %311 = vmatprep.subr.bf16.mxu0 0
    %312 = vmatpush1.bf16.msra.mxu0 0
    %313 = vmatprep.subr.bf16.mxu0 0
    %314 = vmatpush1.bf16.msra.mxu0 0
    %315 = vmatprep.subr.bf16.mxu0 0
    %316 = vmatpush1.bf16.msra.mxu0 0
    %317 = vmatprep.mubr.bf16.mxu0 0
    %318 = vmatmul.mubr.bf16.gmra.mrb[0].mxu0 %v262
    %v319 = vpop.f32.mrb[0].mxu0
    %v320 = vadd.f32 %v234, %v319
    %v321 = vpop.f32.mrb[0].mxu0
    %v322 = vpop.f32.mrb[0].mxu0
    %v323 = vadd.f32 %v234, %v322
    %v324 = vpop.f32.mrb[0].mxu0
    %325 = vmatprep.mubr.bf16.mxu0 0
    %326 = vmatmul.mubr.bf16.gmra.mrb[0].mxu0 %v265
    %v327 = vpop.f32.mrb[0].mxu0
    %v328 = vadd.f32 %v234, %v327
    %v329 = vpop.f32.mrb[0].mxu0
    %v330 = vpop.f32.mrb[0].mxu0
    %v331 = vadd.f32 %v234, %v330
    %v332 = vpop.f32.mrb[0].mxu0
    %333 = vmatprep.mubr.bf16.mxu0 0
    %334 = vmatmul.mubr.bf16.gmra.mrb[0].mxu0 %v268
    %v335 = vpop.f32.mrb[0].mxu0
    %v336 = vadd.f32 %v234, %v335
    %v337 = vpop.f32.mrb[0].mxu0
    %v338 = vpop.f32.mrb[0].mxu0
    %v339 = vadd.f32 %v234, %v338
    %v340 = vpop.f32.mrb[0].mxu0
    %341 = vmatprep.mubr.bf16.mxu0 0
    %342 = vmatmul.mubr.bf16.gmra.mrb[0].mxu0 %v271
    %v343 = vpop.f32.mrb[0].mxu0
    %v344 = vadd.f32 %v234, %v343
    %v345 = vpop.f32.mrb[0].mxu0
    %v346 = vpop.f32.mrb[0].mxu0
    %v347 = vadd.f32 %v234, %v346
    %v348 = vpop.f32.mrb[0].mxu0
    %349 = vmatprep.mubr.bf16.mxu0 0
    %350 = vmatmul.mubr.bf16.gmra.mrb[0].mxu0 %v274
    %v351 = vpop.f32.mrb[0].mxu0
    %v352 = vadd.f32 %v234, %v351
    %v353 = vpop.f32.mrb[0].mxu0
    %v354 = vpop.f32.mrb[0].mxu0
    %v355 = vadd.f32 %v234, %v354
    %v356 = vpop.f32.mrb[0].mxu0
    %357 = vmatprep.mubr.bf16.mxu0 0
    %358 = vmatmul.mubr.bf16.gmra.mrb[0].mxu0 %v277
    %v359 = vpop.f32.mrb[0].mxu0
    %v360 = vadd.f32 %v234, %v359
    %v361 = vpop.f32.mrb[0].mxu0
    %v362 = vpop.f32.mrb[0].mxu0
    %v363 = vadd.f32 %v234, %v362
    %v364 = vpop.f32.mrb[0].mxu0
    %365 = vmatprep.mubr.bf16.mxu0 0
    %366 = vmatmul.mubr.bf16.gmra.mrb[0].mxu0 %v280
    %v367 = vpop.f32.mrb[0].mxu0
    %v368 = vadd.f32 %v234, %v367
    %v369 = vpop.f32.mrb[0].mxu0
    %v370 = vpop.f32.mrb[0].mxu0
    %v371 = vadd.f32 %v234, %v370
    %v372 = vpop.f32.mrb[0].mxu0
    %373 = vmatprep.mubr.bf16.mxu0 0
    %374 = vmatmul.mubr.bf16.gmra.mrb[0].mxu0 %v283
    %v375 = vpop.f32.mrb[0].mxu0
    %v376 = vadd.f32 %v234, %v375
    %v377 = vpop.f32.mrb[0].mxu0
    %v378 = vpop.f32.mrb[0].mxu0
    %v379 = vadd.f32 %v234, %v378
    %v380 = vpop.f32.mrb[0].mxu0
    %381 = vdwg.mxu0
    %v382 = vmax.f32 %v320, 0.0
    %v383 = vmax.f32 %v323, 0.0
    %v384 = vmax.f32 %v328, 0.0
    %v385 = vmax.f32 %v331, 0.0
    %v386 = vmax.f32 %v336, 0.0
    %v387 = vmax.f32 %v339, 0.0
    %v388 = vmax.f32 %v344, 0.0
    %v389 = vmax.f32 %v347, 0.0
    %v390 = vmax.f32 %v352, 0.0
    %v391 = vmax.f32 %v355, 0.0
    %v392 = vmax.f32 %v360, 0.0
    %v393 = vmax.f32 %v363, 0.0
    %v394 = vmax.f32 %v368, 0.0
    %v395 = vmax.f32 %v371, 0.0
    %v396 = vmax.f32 %v376, 0.0
    %v397 = vmax.f32 %v379, 0.0
    %v398 = vpack.c.bf16 %v383, %v382
    %v399 = vpack.c.bf16 %v385, %v384
    %v400 = vpack.c.bf16 %v387, %v386
    %v401 = vpack.c.bf16 %v389, %v388
    %v402 = vpack.c.bf16 %v391, %v390
    %v403 = vpack.c.bf16 %v393, %v392
    %v404 = vpack.c.bf16 %v395, %v394
    %v405 = vpack.c.bf16 %v397, %v396
    %v406 = vld [vmem:[%s5] sm:$0xf]
    %v407 = vld [vmem:[%s5 + $0x4] sm:$0xf]
    %v408 = vld [vmem:[%s5 + $0x8] sm:$0xf]
    %v409 = vld [vmem:[%s5 + $0xc] sm:$0xf]
    %v410 = vld [vmem:[%s5 + $0x10] sm:$0xf]
    %v411 = vld [vmem:[%s5 + $0x14] sm:$0xf]
    %v412 = vld [vmem:[%s5 + $0x18] sm:$0xf]
    %v413 = vld [vmem:[%s5 + $0x1c] sm:$0xf]
    %v414 = vld [vmem:[%s5 + $0x20] sm:$0xf]
    %v415 = vld [vmem:[%s5 + $0x24] sm:$0xf]
    %v416 = vld [vmem:[%s5 + $0x28] sm:$0xf]
    %v417 = vld [vmem:[%s5 + $0x2c] sm:$0xf]
    %v418 = vld [vmem:[%s5 + $0x30] sm:$0xf]
    %v419 = vld [vmem:[%s5 + $0x34] sm:$0xf]
    %v420 = vld [vmem:[%s5 + $0x38] sm:$0xf]
    %v421 = vld [vmem:[%s5 + $0x3c] sm:$0xf]
    %v422 = vld [vmem:[%s6] sm:$0x1]
    %v424 = vlaneseq
    %v425 = vshrl.u32 %v424, 7
    %v426 = vsub.s32 0, %v425
    %v427 = vrot.slane %v422, %v426
    %v445 = vunpack.c.l.b16 %v406
    %v446 = vunpack.c.l.b16 %v407
    %v447 = vunpack.c.l.b16 %v408
    %v448 = vunpack.c.l.b16 %v409
    %v449 = vunpack.c.l.b16 %v410
    %v450 = vunpack.c.l.b16 %v411
    %v451 = vunpack.c.l.b16 %v412
    %v452 = vunpack.c.l.b16 %v413
    %v453 = vunpack.c.l.b16 %v414
    %v454 = vunpack.c.l.b16 %v415
    %v455 = vunpack.c.l.b16 %v416
    %v456 = vunpack.c.l.b16 %v417
    %v457 = vunpack.c.l.b16 %v418
    %v458 = vunpack.c.l.b16 %v419
    %v459 = vunpack.c.l.b16 %v420
    %v460 = vunpack.c.l.b16 %v421
    %v461 = vpack.c.b16 %v446, %v445
    %v462 = vpack.c.b16 %v448, %v447
    %v463 = vpack.c.b16 %v450, %v449
    %v464 = vpack.c.b16 %v452, %v451
    %v465 = vpack.c.b16 %v454, %v453
    %v466 = vpack.c.b16 %v456, %v455
    %v467 = vpack.c.b16 %v458, %v457
    %v468 = vpack.c.b16 %v460, %v459
    %477 = vmatprep.subr.bf16.mxu0 0
    %478 = vmatpush1.bf16.msra.mxu0 %v461
    %479 = vmatprep.subr.bf16.mxu0 0
    %480 = vmatpush1.bf16.msra.mxu0 %v462
    %481 = vmatprep.subr.bf16.mxu0 0
    %482 = vmatpush1.bf16.msra.mxu0 %v463
    %483 = vmatprep.subr.bf16.mxu0 0
    %484 = vmatpush1.bf16.msra.mxu0 %v464
    %485 = vmatprep.subr.bf16.mxu0 0
    %486 = vmatpush1.bf16.msra.mxu0 %v465
    %487 = vmatprep.subr.bf16.mxu0 0
    %488 = vmatpush1.bf16.msra.mxu0 %v466
    %489 = vmatprep.subr.bf16.mxu0 0
    %490 = vmatpush1.bf16.msra.mxu0 %v467
    %491 = vmatprep.subr.bf16.mxu0 0
    %492 = vmatpush1.bf16.msra.mxu0 %v468
    %493 = vmatprep.subr.bf16.mxu0 0
    %494 = vmatpush1.bf16.msra.mxu0 0
    %495 = vmatprep.subr.bf16.mxu0 0
    %496 = vmatpush1.bf16.msra.mxu0 0
    %497 = vmatprep.subr.bf16.mxu0 0
    %498 = vmatpush1.bf16.msra.mxu0 0
    %499 = vmatprep.subr.bf16.mxu0 0
    %500 = vmatpush1.bf16.msra.mxu0 0
    %501 = vmatprep.subr.bf16.mxu0 0
    %502 = vmatpush1.bf16.msra.mxu0 0
    %503 = vmatprep.subr.bf16.mxu0 0
    %504 = vmatpush1.bf16.msra.mxu0 0
    %505 = vmatprep.subr.bf16.mxu0 0
    %506 = vmatpush1.bf16.msra.mxu0 0
    %507 = vmatprep.subr.bf16.mxu0 0
    %508 = vmatpush1.bf16.msra.mxu0 0
    %509 = vmatprep.mubr.bf16.mxu0 0
    %510 = vmatmul.mubr.bf16.gmra.mrb[0].mxu0 %v398
    %v511 = vpop.f32.mrb[0].mxu0
    %v512 = vadd.f32 %v427, %v511
    %v513 = vpop.f32.mrb[0].mxu0
    %v514 = vpop.f32.mrb[0].mxu0
    %v515 = vadd.f32 %v427, %v514
    %v516 = vpop.f32.mrb[0].mxu0
    %517 = vmatprep.mubr.bf16.mxu0 0
    %518 = vmatmul.mubr.bf16.gmra.mrb[0].mxu0 %v399
    %v519 = vpop.f32.mrb[0].mxu0
    %v520 = vadd.f32 %v427, %v519
    %v521 = vpop.f32.mrb[0].mxu0
    %v522 = vpop.f32.mrb[0].mxu0
    %v523 = vadd.f32 %v427, %v522
    %v524 = vpop.f32.mrb[0].mxu0
    %525 = vmatprep.mubr.bf16.mxu0 0
    %526 = vmatmul.mubr.bf16.gmra.mrb[0].mxu0 %v400
    %v527 = vpop.f32.mrb[0].mxu0
    %v528 = vadd.f32 %v427, %v527
    %v529 = vpop.f32.mrb[0].mxu0
    %v530 = vpop.f32.mrb[0].mxu0
    %v531 = vadd.f32 %v427, %v530
    %v532 = vpop.f32.mrb[0].mxu0
    %533 = vmatprep.mubr.bf16.mxu0 0
    %534 = vmatmul.mubr.bf16.gmra.mrb[0].mxu0 %v401
    %v535 = vpop.f32.mrb[0].mxu0
    %v536 = vadd.f32 %v427, %v535
    %v537 = vpop.f32.mrb[0].mxu0
    %v538 = vpop.f32.mrb[0].mxu0
    %v539 = vadd.f32 %v427, %v538
    %v540 = vpop.f32.mrb[0].mxu0
    %541 = vmatprep.mubr.bf16.mxu0 0
    %542 = vmatmul.mubr.bf16.gmra.mrb[0].mxu0 %v402
    %v543 = vpop.f32.mrb[0].mxu0
    %v544 = vadd.f32 %v427, %v543
    %v545 = vpop.f32.mrb[0].mxu0
    %v546 = vpop.f32.mrb[0].mxu0
    %v547 = vadd.f32 %v427, %v546
    %v548 = vpop.f32.mrb[0].mxu0
    %549 = vmatprep.mubr.bf16.mxu0 0
    %550 = vmatmul.mubr.bf16.gmra.mrb[0].mxu0 %v403
    %v551 = vpop.f32.mrb[0].mxu0
    %v552 = vadd.f32 %v427, %v551
    %v553 = vpop.f32.mrb[0].mxu0
    %v554 = vpop.f32.mrb[0].mxu0
    %v555 = vadd.f32 %v427, %v554
    %v556 = vpop.f32.mrb[0].mxu0
    %557 = vmatprep.mubr.bf16.mxu0 0
    %558 = vmatmul.mubr.bf16.gmra.mrb[0].mxu0 %v404
    %v559 = vpop.f32.mrb[0].mxu0
    %v560 = vadd.f32 %v427, %v559
    %v561 = vpop.f32.mrb[0].mxu0
    %v562 = vpop.f32.mrb[0].mxu0
    %v563 = vadd.f32 %v427, %v562
    %v564 = vpop.f32.mrb[0].mxu0
    %565 = vmatprep.mubr.bf16.mxu0 0
    %566 = vmatmul.mubr.bf16.gmra.mrb[0].mxu0 %v405
    %v567 = vpop.f32.mrb[0].mxu0
    %v568 = vadd.f32 %v427, %v567
    %v569 = vpop.f32.mrb[0].mxu0
    %v570 = vpop.f32.mrb[0].mxu0
    %v571 = vadd.f32 %v427, %v570
    %v572 = vpop.f32.mrb[0].mxu0
    %573 = vdwg.mxu0
    %v574 = vmax.f32 %v512, 0.0
    %v575 = vmax.f32 %v515, 0.0
    %v576 = vmax.f32 %v520, 0.0
    %v577 = vmax.f32 %v523, 0.0
    %v578 = vmax.f32 %v528, 0.0
    %v579 = vmax.f32 %v531, 0.0
    %v580 = vmax.f32 %v536, 0.0
    %v581 = vmax.f32 %v539, 0.0
    %v582 = vmax.f32 %v544, 0.0
    %v583 = vmax.f32 %v547, 0.0
    %v584 = vmax.f32 %v552, 0.0
    %v585 = vmax.f32 %v555, 0.0
    %v586 = vmax.f32 %v560, 0.0
    %v587 = vmax.f32 %v563, 0.0
    %v588 = vmax.f32 %v568, 0.0
    %v589 = vmax.f32 %v571, 0.0
    %v590 = vld [vmem:[%s7] sm:$0x1]
    %v592 = vlaneseq
    %v593 = vshrl.u32 %v592, 7
    %v594 = vsub.s32 0, %v593
    %v595 = vrot.slane %v590, %v594
    %v597 = vmul.f32 %v574, %v595
    %v598 = vmul.f32 %v575, %v595
    %v599 = vmul.f32 %v576, %v595
    %v600 = vmul.f32 %v577, %v595
    %v601 = vmul.f32 %v578, %v595
    %v602 = vmul.f32 %v579, %v595
    %v603 = vmul.f32 %v580, %v595
    %v604 = vmul.f32 %v581, %v595
    %v605 = vmul.f32 %v582, %v595
    %v606 = vmul.f32 %v583, %v595
    %v607 = vmul.f32 %v584, %v595
    %v608 = vmul.f32 %v585, %v595
    %v609 = vmul.f32 %v586, %v595
    %v610 = vmul.f32 %v587, %v595
    %v611 = vmul.f32 %v588, %v595
    %v612 = vmul.f32 %v589, %v595
    %613 = vadd.xlane.f32.xlu0 %v597
    %v614 = vpop.xlane.xlu0 %613
    %615 = vadd.xlane.f32.xlu0 %v598
    %v616 = vpop.xlane.xlu0 %615
    %617 = vadd.xlane.f32.xlu0 %v599
    %v618 = vpop.xlane.xlu0 %617
    %619 = vadd.xlane.f32.xlu0 %v600
    %v620 = vpop.xlane.xlu0 %619
    %621 = vadd.xlane.f32.xlu0 %v601
    %v622 = vpop.xlane.xlu0 %621
    %623 = vadd.xlane.f32.xlu0 %v602
    %v624 = vpop.xlane.xlu0 %623
    %625 = vadd.xlane.f32.xlu0 %v603
    %v626 = vpop.xlane.xlu0 %625
    %627 = vadd.xlane.f32.xlu0 %v604
    %v628 = vpop.xlane.xlu0 %627
    %629 = vadd.xlane.f32.xlu0 %v605
    %v630 = vpop.xlane.xlu0 %629
    %631 = vadd.xlane.f32.xlu0 %v606
    %v632 = vpop.xlane.xlu0 %631
    %633 = vadd.xlane.f32.xlu0 %v607
    %v634 = vpop.xlane.xlu0 %633
    %635 = vadd.xlane.f32.xlu0 %v608
    %v636 = vpop.xlane.xlu0 %635
    %637 = vadd.xlane.f32.xlu0 %v609
    %v638 = vpop.xlane.xlu0 %637
    %639 = vadd.xlane.f32.xlu0 %v610
    %v640 = vpop.xlane.xlu0 %639
    %641 = vadd.xlane.f32.xlu0 %v611
    %v642 = vpop.xlane.xlu0 %641
    %643 = vadd.xlane.f32.xlu0 %v612
    %v644 = vpop.xlane.xlu0 %643
    %v645 = vld [vmem:[#allocation2] sm:$0x1]
    %647 = vset.pattern.permute.xlu0 0
    %648 = vperm.xlu0 %647, %v645
    %v649 = vpop.permute.xlu0 %648
    %v651 = vlaneseq
    %v652 = vshrl.u32 %v651, 7
    %v653 = vsub.s32 0, %v652
    %v654 = vrot.slane %v649, %v653
    %v655 = vadd.f32 %v614, %v654
    %v656 = vadd.f32 %v616, %v654
    %v657 = vadd.f32 %v618, %v654
    %v658 = vadd.f32 %v620, %v654
    %v659 = vadd.f32 %v622, %v654
    %v660 = vadd.f32 %v624, %v654
    %v661 = vadd.f32 %v626, %v654
    %v662 = vadd.f32 %v628, %v654
    %v663 = vadd.f32 %v630, %v654
    %v664 = vadd.f32 %v632, %v654
    %v665 = vadd.f32 %v634, %v654
    %v666 = vadd.f32 %v636, %v654
    %v667 = vadd.f32 %v638, %v654
    %v668 = vadd.f32 %v640, %v654
    %v669 = vadd.f32 %v642, %v654
    %v670 = vadd.f32 %v644, %v654
    %v671 = vsub.f32 0.0, %v655
    %v672 = vsub.f32 0.0, %v656
    %v673 = vsub.f32 0.0, %v657
    %v674 = vsub.f32 0.0, %v658
    %v675 = vsub.f32 0.0, %v659
    %v676 = vsub.f32 0.0, %v660
    %v677 = vsub.f32 0.0, %v661
    %v678 = vsub.f32 0.0, %v662
    %v679 = vsub.f32 0.0, %v663
    %v680 = vsub.f32 0.0, %v664
    %v681 = vsub.f32 0.0, %v665
    %v682 = vsub.f32 0.0, %v666
    %v683 = vsub.f32 0.0, %v667
    %v684 = vsub.f32 0.0, %v668
    %v685 = vsub.f32 0.0, %v669
    %v686 = vsub.f32 0.0, %v670
    %v687 = vmul.f32 %v671, 1.442695
    %v688 = vpow.pop %v687
    %v689 = vmul.f32 %v672, 1.442695
    %v690 = vpow.pop %v689
    %v691 = vmul.f32 %v673, 1.442695
    %v692 = vpow.pop %v691
    %v693 = vmul.f32 %v674, 1.442695
    %v694 = vpow.pop %v693
    %v695 = vmul.f32 %v675, 1.442695
    %v696 = vpow.pop %v695
    %v697 = vmul.f32 %v676, 1.442695
    %v698 = vpow.pop %v697
    %v699 = vmul.f32 %v677, 1.442695
    %v700 = vpow.pop %v699
    %v701 = vmul.f32 %v678, 1.442695
    %v702 = vpow.pop %v701
    %v703 = vmul.f32 %v679, 1.442695
    %v704 = vpow.pop %v703
    %v705 = vmul.f32 %v680, 1.442695
    %v706 = vpow.pop %v705
    %v707 = vmul.f32 %v681, 1.442695
    %v708 = vpow.pop %v707
    %v709 = vmul.f32 %v682, 1.442695
    %v710 = vpow.pop %v709
    %v711 = vmul.f32 %v683, 1.442695
    %v712 = vpow.pop %v711
    %v713 = vmul.f32 %v684, 1.442695
    %v714 = vpow.pop %v713
    %v715 = vmul.f32 %v685, 1.442695
    %v716 = vpow.pop %v715
    %v717 = vmul.f32 %v686, 1.442695
    %v718 = vpow.pop %v717
    %v719 = vadd.f32 %v688, 1.0
    %v720 = vadd.f32 %v690, 1.0
    %v721 = vadd.f32 %v692, 1.0
    %v722 = vadd.f32 %v694, 1.0
    %v723 = vadd.f32 %v696, 1.0
    %v724 = vadd.f32 %v698, 1.0
    %v725 = vadd.f32 %v700, 1.0
    %v726 = vadd.f32 %v702, 1.0
    %v727 = vadd.f32 %v704, 1.0
    %v728 = vadd.f32 %v706, 1.0
    %v729 = vadd.f32 %v708, 1.0
    %v730 = vadd.f32 %v710, 1.0
    %v731 = vadd.f32 %v712, 1.0
    %v732 = vadd.f32 %v714, 1.0
    %v733 = vadd.f32 %v716, 1.0
    %v734 = vadd.f32 %v718, 1.0
    %v735 = vrcp.pop %v719
    %v736 = vmul.f32 1.0, %v735
    %v737 = vrcp.pop %v720
    %v738 = vmul.f32 1.0, %v737
    %v739 = vrcp.pop %v721
    %v740 = vmul.f32 1.0, %v739
    %v741 = vrcp.pop %v722
    %v742 = vmul.f32 1.0, %v741
    %v743 = vrcp.pop %v723
    %v744 = vmul.f32 1.0, %v743
    %v745 = vrcp.pop %v724
    %v746 = vmul.f32 1.0, %v745
    %v747 = vrcp.pop %v725
    %v748 = vmul.f32 1.0, %v747
    %v749 = vrcp.pop %v726
    %v750 = vmul.f32 1.0, %v749
    %v751 = vrcp.pop %v727
    %v752 = vmul.f32 1.0, %v751
    %v753 = vrcp.pop %v728
    %v754 = vmul.f32 1.0, %v753
    %v755 = vrcp.pop %v729
    %v756 = vmul.f32 1.0, %v755
    %v757 = vrcp.pop %v730
    %v758 = vmul.f32 1.0, %v757
    %v759 = vrcp.pop %v731
    %v760 = vmul.f32 1.0, %v759
    %v761 = vrcp.pop %v732
    %v762 = vmul.f32 1.0, %v761
    %v763 = vrcp.pop %v733
    %v764 = vmul.f32 1.0, %v763
    %v765 = vrcp.pop %v734
    %v766 = vmul.f32 1.0, %v765
    %v783 = vlaneseq
    %v784 = vand.u32 %v783, 127
    %v785 = vlaneseq
    %v786 = vshrl.u32 %v785, 7
    %v787 = vsub.s32 %v784, %v786
    %v788 = vrot.slane %v736, %v787
    %v789 = vadd.s32 %v784, 4294967288
    %v790 = vlaneseq
    %v791 = vshrl.u32 %v790, 7
    %v792 = vsub.s32 %v789, %v791
    %v793 = vrot.slane %v738, %v792
    %vm794 = vcmask 130112
    %v795 = vsel %vm794, %v793, %v788
    %v796 = vadd.s32 %v784, 4294967280
    %v797 = vlaneseq
    %v798 = vshrl.u32 %v797, 7
    %v799 = vsub.s32 %v796, %v798
    %v800 = vrot.slane %v740, %v799
    %vm801 = vcmask 195712
    %v802 = vsel %vm801, %v800, %v795
    %v803 = vadd.s32 %v784, 4294967272
    %v804 = vlaneseq
    %v805 = vshrl.u32 %v804, 7
    %v806 = vsub.s32 %v803, %v805
    %v807 = vrot.slane %v742, %v806
    %vm808 = vcmask 261312
    %v809 = vsel %vm808, %v807, %v802
    %v810 = vadd.s32 %v784, 4294967264
    %v811 = vlaneseq
    %v812 = vshrl.u32 %v811, 7
    %v813 = vsub.s32 %v810, %v812
    %v814 = vrot.slane %v744, %v813
    %vm815 = vcmask 326912
    %v816 = vsel %vm815, %v814, %v809
    %v817 = vadd.s32 %v784, 4294967256
    %v818 = vlaneseq
    %v819 = vshrl.u32 %v818, 7
    %v820 = vsub.s32 %v817, %v819
    %v821 = vrot.slane %v746, %v820
    %vm822 = vcmask 392512
    %v823 = vsel %vm822, %v821, %v816
    %v824 = vadd.s32 %v784, 4294967248
    %v825 = vlaneseq
    %v826 = vshrl.u32 %v825, 7
    %v827 = vsub.s32 %v824, %v826
    %v828 = vrot.slane %v748, %v827
    %vm829 = vcmask 458112
    %v830 = vsel %vm829, %v828, %v823
    %v831 = vadd.s32 %v784, 4294967240
    %v832 = vlaneseq
    %v833 = vshrl.u32 %v832, 7
    %v834 = vsub.s32 %v831, %v833
    %v835 = vrot.slane %v750, %v834
    %vm836 = vcmask 523712
    %v837 = vsel %vm836, %v835, %v830
    %v838 = vadd.s32 %v784, 4294967232
    %v839 = vlaneseq
    %v840 = vshrl.u32 %v839, 7
    %v841 = vsub.s32 %v838, %v840
    %v842 = vrot.slane %v752, %v841
    %vm843 = vcmask 589312
    %v844 = vsel %vm843, %v842, %v837
    %v845 = vadd.s32 %v784, 4294967224
    %v846 = vlaneseq
    %v847 = vshrl.u32 %v846, 7
    %v848 = vsub.s32 %v845, %v847
    %v849 = vrot.slane %v754, %v848
    %vm850 = vcmask 654912
    %v851 = vsel %vm850, %v849, %v844
    %v852 = vadd.s32 %v784, 4294967216
    %v853 = vlaneseq
    %v854 = vshrl.u32 %v853, 7
    %v855 = vsub.s32 %v852, %v854
    %v856 = vrot.slane %v756, %v855
    %vm857 = vcmask 720512
    %v858 = vsel %vm857, %v856, %v851
    %v859 = vadd.s32 %v784, 4294967208
    %v860 = vlaneseq
    %v861 = vshrl.u32 %v860, 7
    %v862 = vsub.s32 %v859, %v861
    %v863 = vrot.slane %v758, %v862
    %vm864 = vcmask 786112
    %v865 = vsel %vm864, %v863, %v858
    %v866 = vadd.s32 %v784, 4294967200
    %v867 = vlaneseq
    %v868 = vshrl.u32 %v867, 7
    %v869 = vsub.s32 %v866, %v868
    %v870 = vrot.slane %v760, %v869
    %vm871 = vcmask 851712
    %v872 = vsel %vm871, %v870, %v865
    %v873 = vadd.s32 %v784, 4294967192
    %v874 = vlaneseq
    %v875 = vshrl.u32 %v874, 7
    %v876 = vsub.s32 %v873, %v875
    %v877 = vrot.slane %v762, %v876
    %vm878 = vcmask 917312
    %v879 = vsel %vm878, %v877, %v872
    %v880 = vadd.s32 %v784, 4294967184
    %v881 = vlaneseq
    %v882 = vshrl.u32 %v881, 7
    %v883 = vsub.s32 %v880, %v882
    %v884 = vrot.slane %v764, %v883
    %vm885 = vcmask 982912
    %v886 = vsel %vm885, %v884, %v879
    %v887 = vadd.s32 %v784, 4294967176
    %v888 = vlaneseq
    %v889 = vshrl.u32 %v888, 7
    %v890 = vsub.s32 %v887, %v889
    %v891 = vrot.slane %v766, %v890
    %vm892 = vcmask 1048512
    %v893 = vsel %vm892, %v891, %v886
    %895 = vst [vmem:[#allocation3] sm:$0x1] %v893
    // Predicated region
    $region38: #{tpu_custom_call.1} parent=1 // pred_check
      _
    $region39: #{tpu_custom_call.1} parent=1 // pred_check_branch
      %897 = sbr.rel (0) target = $region41
    $region40: #{tpu_custom_call.1} parent=1 // pred_region
      %s899 = ssub.s32 16, 16
      %900 = vsyncadd [#allocation4], %s899
      %s902 = sshll.u32 [#allocation3], 4
      %s903 = int_to_ptr.vmem [resolvable:$true] %s902
      %905 = dma.vmem_to_hbm [thread:$0]  %s903, 16, %s9, [#allocation4]
    $region41: #{tpu_custom_call.1} parent=1 // pred_fallthru
      _
    // Predicated region
    $region42: #{tpu_custom_call.1} parent=1 // pred_check
      _
    $region43: #{tpu_custom_call.1} parent=1 // pred_check_branch
      %907 = sbr.rel (0) target = $region45
    $region44: #{tpu_custom_call.1} parent=1 // pred_region
      %908 = dma.done [#allocation4], 16
    $region45: #{tpu_custom_call.1} parent=1 // pred_fallthru
      _
    %909 = vsyncpa [#allocation4], 1

// kernel: tpu_custom_call.1
$region0: #{tpu_custom_call.1}
  #allocation0 [shape = 'u32[]', space=smem, size = 0x4, offset = 0x4, fixed_abs, tag = 'smem constant byte address 0x4 - core index']
  #allocation1 [shape = 'u32[144,128]{1,0:T(1,128)}', space=vmem, size = 0x12000, scoped, tag = 'internal scratch']
  #allocation2 [shape = 'f32[1,1]{1,0:T(1,128)S(1)}', space=vmem, size = 0x200, scoped, tag = 'scoped memory for tpu_custom_call.1']
  %s0 = inlined_call_operand.vmem [shape: f32[128,16], index: 0, kind: input, shape index: {}]
  %s1 = inlined_call_operand.vmem [shape: bf16[16,64], index: 1, kind: input, shape index: {}]
  %s2 = inlined_call_operand.vmem [shape: f32[1,64], index: 2, kind: input, shape index: {}]
  %s3 = inlined_call_operand.vmem [shape: bf16[64,128], index: 3, kind: input, shape index: {}]
  %s4 = inlined_call_operand.vmem [shape: f32[1,128], index: 4, kind: input, shape index: {}]
  %s5 = inlined_call_operand.vmem [shape: bf16[128,128], index: 5, kind: input, shape index: {}]
  %s6 = inlined_call_operand.vmem [shape: f32[1,128], index: 6, kind: input, shape index: {}]
  %s7 = inlined_call_operand.vmem [shape: f32[1,128], index: 7, kind: input, shape index: {}]
  %s8 = inlined_call_operand.<no memory space> [shape: f32[1,1], index: 8, kind: input, shape index: {}]
  %s9 = inlined_call_operand.vmem [shape: f32[128,1], index: 9, kind: output, shape index: {}]
  %s10 = sld [smem:[#allocation0]]
  $region46: #{tpu_custom_call.1} parent=0
    _
  %s12 = ssub.s32 1, %s10
  %s13 = scalar_select 0, %s12, %s10
  %v14 = vstv %s8
  %15 = vst [vmem:[#allocation2] sm:$0x1] %v14
  // Predicated region
  $region2: #{tpu_custom_call.1} parent=0 // pred_check
    _
  $region3: #{tpu_custom_call.1} parent=0 // pred_check_branch
    %17 = sbr.rel (0) target = $region5
  $region4: #{tpu_custom_call.1} parent=0 // pred_region
    _
  $region5: #{tpu_custom_call.1} parent=0 // pred_fallthru
    _
  // Predicated region
  $region6: #{tpu_custom_call.1} parent=0 // pred_check
    _
  $region7: #{tpu_custom_call.1} parent=0 // pred_check_branch
    %19 = sbr.rel (0) target = $region9
  $region8: #{tpu_custom_call.1} parent=0 // pred_region
    _
  $region9: #{tpu_custom_call.1} parent=0 // pred_fallthru
    _
  // Predicated region
  $region10: #{tpu_custom_call.1} parent=0 // pred_check
    _
  $region11: #{tpu_custom_call.1} parent=0 // pred_check_branch
    %21 = sbr.rel (0) target = $region13
  $region12: #{tpu_custom_call.1} parent=0 // pred_region
    _
  $region13: #{tpu_custom_call.1} parent=0 // pred_fallthru
    _
  // Predicated region
  $region14: #{tpu_custom_call.1} parent=0 // pred_check
    _
  $region15: #{tpu_custom_call.1} parent=0 // pred_check_branch
    %23 = sbr.rel (0) target = $region17
  $region16: #{tpu_custom_call.1} parent=0 // pred_region
    _
  $region17: #{tpu_custom_call.1} parent=0 // pred_fallthru
    _
  // Predicated region
  $region18: #{tpu_custom_call.1} parent=0 // pred_check
    _
  $region19: #{tpu_custom_call.1} parent=0 // pred_check_branch
    %25 = sbr.rel (0) target = $region21
  $region20: #{tpu_custom_call.1} parent=0 // pred_region
    _
  $region21: #{tpu_custom_call.1} parent=0 // pred_fallthru
    _
  // Predicated region
  $region22: #{tpu_custom_call.1} parent=0 // pred_check
    _
  $region23: #{tpu_custom_call.1} parent=0 // pred_check_branch
    %27 = sbr.rel (0) target = $region25
  $region24: #{tpu_custom_call.1} parent=0 // pred_region
    _
  $region25: #{tpu_custom_call.1} parent=0 // pred_fallthru
    _
  // Predicated region
  $region26: #{tpu_custom_call.1} parent=0 // pred_check
    _
  $region27: #{tpu_custom_call.1} parent=0 // pred_check_branch
    %29 = sbr.rel (0) target = $region29
  $region28: #{tpu_custom_call.1} parent=0 // pred_region
    _
  $region29: #{tpu_custom_call.1} parent=0 // pred_fallthru
    _
  // Predicated region
  $region30: #{tpu_custom_call.1} parent=0 // pred_check
    _
  $region31: #{tpu_custom_call.1} parent=0 // pred_check_branch
    %31 = sbr.rel (0) target = $region33
  $region32: #{tpu_custom_call.1} parent=0 // pred_region
    _
  $region33: #{tpu_custom_call.1} parent=0 // pred_fallthru
    _
  // Predicated region
  $region34: #{tpu_custom_call.1} parent=0 // pred_check
    _
  $region35: #{tpu_custom_call.1} parent=0 // pred_check_branch
    %33 = sbr.rel (0) target = $region37
  $region36: #{tpu_custom_call.1} parent=0 // pred_region
    _
  $region37: #{tpu_custom_call.1} parent=0 // pred_fallthru
    _
  %v35 = vld [vmem:[%s0] sm:$0xff]
  %v36 = vld [vmem:[%s0 + $0x8] sm:$0xff]
  %v37 = vld [vmem:[%s0 + $0x10] sm:$0xff]
  %v38 = vld [vmem:[%s0 + $0x18] sm:$0xff]
  %v39 = vld [vmem:[%s0 + $0x20] sm:$0xff]
  %v40 = vld [vmem:[%s0 + $0x28] sm:$0xff]
  %v41 = vld [vmem:[%s0 + $0x30] sm:$0xff]
  %v42 = vld [vmem:[%s0 + $0x38] sm:$0xff]
  %v43 = vld [vmem:[%s0 + $0x40] sm:$0xff]
  %v44 = vld [vmem:[%s0 + $0x48] sm:$0xff]
  %v45 = vld [vmem:[%s0 + $0x50] sm:$0xff]
  %v46 = vld [vmem:[%s0 + $0x58] sm:$0xff]
  %v47 = vld [vmem:[%s0 + $0x60] sm:$0xff]
  %v48 = vld [vmem:[%s0 + $0x68] sm:$0xff]
  %v49 = vld [vmem:[%s0 + $0x70] sm:$0xff]
  %v50 = vld [vmem:[%s0 + $0x78] sm:$0xff]
  %v51 = vpack.c.bf16 %v36, %v35
  %v52 = vpack.c.bf16 %v38, %v37
  %v53 = vpack.c.bf16 %v40, %v39
  %v54 = vpack.c.bf16 %v42, %v41
  %v55 = vpack.c.bf16 %v44, %v43
  %v56 = vpack.c.bf16 %v46, %v45
  %v57 = vpack.c.bf16 %v48, %v47
  %v58 = vpack.c.bf16 %v50, %v49
  %v59 = vld [vmem:[%s1] sm:$0xf]
  %v60 = vld [vmem:[%s1 + $0x4] sm:$0xf]
  %v61 = vld [vmem:[%s2] sm:$0x1]
  %v63 = vlaneseq
  %v64 = vshrl.u32 %v63, 7
  %v65 = vsub.s32 0, %v64
  %v66 = vrot.slane %v61, %v65
  %v70 = vunpack.c.l.b16 %v59
  %v71 = vunpack.c.l.b16 %v60
  %v72 = vpack.c.b16 %v71, %v70
  %vm74 = vcmask 130048
  %v76 = vsel %vm74, %v51, 0
  %v79 = vsel %vm74, %v52, 0
  %v82 = vsel %vm74, %v53, 0
  %v85 = vsel %vm74, %v54, 0
  %v88 = vsel %vm74, %v55, 0
  %v91 = vsel %vm74, %v56, 0
  %v94 = vsel %vm74, %v57, 0
  %v97 = vsel %vm74, %v58, 0
  %99 = vmatprep.subr.bf16.mxu0 0
  %100 = vmatpush1.bf16.msra.mxu0 %v72
  %101 = vmatprep.subr.bf16.mxu0 0
  %102 = vmatpush1.bf16.msra.mxu0 0
  %103 = vmatprep.subr.bf16.mxu0 0
  %104 = vmatpush1.bf16.msra.mxu0 0
  %105 = vmatprep.subr.bf16.mxu0 0
  %106 = vmatpush1.bf16.msra.mxu0 0
  %107 = vmatprep.subr.bf16.mxu0 0
  %108 = vmatpush1.bf16.msra.mxu0 0
  %109 = vmatprep.subr.bf16.mxu0 0
  %110 = vmatpush1.bf16.msra.mxu0 0
  %111 = vmatprep.subr.bf16.mxu0 0
  %112 = vmatpush1.bf16.msra.mxu0 0
  %113 = vmatprep.subr.bf16.mxu0 0
  %114 = vmatpush1.bf16.msra.mxu0 0
  %115 = vmatprep.subr.bf16.mxu0 0
  %116 = vmatpush1.bf16.msra.mxu0 0
  %117 = vmatprep.subr.bf16.mxu0 0
  %118 = vmatpush1.bf16.msra.mxu0 0
  %119 = vmatprep.subr.bf16.mxu0 0
  %120 = vmatpush1.bf16.msra.mxu0 0
  %121 = vmatprep.subr.bf16.mxu0 0
  %122 = vmatpush1.bf16.msra.mxu0 0
  %123 = vmatprep.subr.bf16.mxu0 0
  %124 = vmatpush1.bf16.msra.mxu0 0
  %125 = vmatprep.subr.bf16.mxu0 0
  %126 = vmatpush1.bf16.msra.mxu0 0
  %127 = vmatprep.subr.bf16.mxu0 0
  %128 = vmatpush1.bf16.msra.mxu0 0
  %129 = vmatprep.subr.bf16.mxu0 0
  %130 = vmatpush1.bf16.msra.mxu0 0
  %131 = vmatprep.mubr.bf16.mxu0 0
  %132 = vmatmul.mubr.bf16.gmra.mrb[0].mxu0 %v76
  %v133 = vpop.f32.mrb[0].mxu0
  %v134 = vadd.f32 %v66, %v133
  %v135 = vpop.f32.mrb[0].mxu0
  %v136 = vpop.f32.mrb[0].mxu0
  %v137 = vadd.f32 %v66, %v136
  %v138 = vpop.f32.mrb[0].mxu0
  %139 = vmatprep.mubr.bf16.mxu0 0
  %140 = vmatmul.mubr.bf16.gmra.mrb[0].mxu0 %v79
  %v141 = vpop.f32.mrb[0].mxu0
  %v142 = vadd.f32 %v66, %v141
  %v143 = vpop.f32.mrb[0].mxu0
  %v144 = vpop.f32.mrb[0].mxu0
  %v145 = vadd.f32 %v66, %v144
  %v146 = vpop.f32.mrb[0].mxu0
  %147 = vmatprep.mubr.bf16.mxu0 0
  %148 = vmatmul.mubr.bf16.gmra.mrb[0].mxu0 %v82
  %v149 = vpop.f32.mrb[0].mxu0
  %v150 = vadd.f32 %v66, %v149
  %v151 = vpop.f32.mrb[0].mxu0
  %v152 = vpop.f32.mrb[0].mxu0
  %v153 = vadd.f32 %v66, %v152
  %v154 = vpop.f32.mrb[0].mxu0
  %155 = vmatprep.mubr.bf16.mxu0 0
  %156 = vmatmul.mubr.bf16.gmra.mrb[0].mxu0 %v85
  %v157 = vpop.f32.mrb[0].mxu0
  %v158 = vadd.f32 %v66, %v157
  %v159 = vpop.f32.mrb[0].mxu0
  %v160 = vpop.f32.mrb[0].mxu0
  %v161 = vadd.f32 %v66, %v160
  %v162 = vpop.f32.mrb[0].mxu0
  %163 = vmatprep.mubr.bf16.mxu0 0
  %164 = vmatmul.mubr.bf16.gmra.mrb[0].mxu0 %v88
  %v165 = vpop.f32.mrb[0].mxu0
  %v166 = vadd.f32 %v66, %v165
  %v167 = vpop.f32.mrb[0].mxu0
  %v168 = vpop.f32.mrb[0].mxu0
  %v169 = vadd.f32 %v66, %v168
  %v170 = vpop.f32.mrb[0].mxu0
  %171 = vmatprep.mubr.bf16.mxu0 0
  %172 = vmatmul.mubr.bf16.gmra.mrb[0].mxu0 %v91
  %v173 = vpop.f32.mrb[0].mxu0
  %v174 = vadd.f32 %v66, %v173
  %v175 = vpop.f32.mrb[0].mxu0
  %v176 = vpop.f32.mrb[0].mxu0
  %v177 = vadd.f32 %v66, %v176
  %v178 = vpop.f32.mrb[0].mxu0
  %179 = vmatprep.mubr.bf16.mxu0 0
  %180 = vmatmul.mubr.bf16.gmra.mrb[0].mxu0 %v94
  %v181 = vpop.f32.mrb[0].mxu0
  %v182 = vadd.f32 %v66, %v181
  %v183 = vpop.f32.mrb[0].mxu0
  %v184 = vpop.f32.mrb[0].mxu0
  %v185 = vadd.f32 %v66, %v184
  %v186 = vpop.f32.mrb[0].mxu0
  %187 = vmatprep.mubr.bf16.mxu0 0
  %188 = vmatmul.mubr.bf16.gmra.mrb[0].mxu0 %v97
  %v189 = vpop.f32.mrb[0].mxu0
  %v190 = vadd.f32 %v66, %v189
  %v191 = vpop.f32.mrb[0].mxu0
  %v192 = vpop.f32.mrb[0].mxu0
  %v193 = vadd.f32 %v66, %v192
  %v194 = vpop.f32.mrb[0].mxu0
  %195 = vdwg.mxu0
  %v196 = vmax.f32 %v134, 0.0
  %v197 = vmax.f32 %v137, 0.0
  %v198 = vmax.f32 %v142, 0.0
  %v199 = vmax.f32 %v145, 0.0
  %v200 = vmax.f32 %v150, 0.0
  %v201 = vmax.f32 %v153, 0.0
  %v202 = vmax.f32 %v158, 0.0
  %v203 = vmax.f32 %v161, 0.0
  %v204 = vmax.f32 %v166, 0.0
  %v205 = vmax.f32 %v169, 0.0
  %v206 = vmax.f32 %v174, 0.0
  %v207 = vmax.f32 %v177, 0.0
  %v208 = vmax.f32 %v182, 0.0
  %v209 = vmax.f32 %v185, 0.0
  %v210 = vmax.f32 %v190, 0.0
  %v211 = vmax.f32 %v193, 0.0
  %v212 = vpack.c.bf16 %v197, %v196
  %v213 = vpack.c.bf16 %v199, %v198
  %v214 = vpack.c.bf16 %v201, %v200
  %v215 = vpack.c.bf16 %v203, %v202
  %v216 = vpack.c.bf16 %v205, %v204
  %v217 = vpack.c.bf16 %v207, %v206
  %v218 = vpack.c.bf16 %v209, %v208
  %v219 = vpack.c.bf16 %v211, %v210
  %v220 = vld [vmem:[%s3] sm:$0xf]
  %v221 = vld [vmem:[%s3 + $0x4] sm:$0xf]
  %v222 = vld [vmem:[%s3 + $0x8] sm:$0xf]
  %v223 = vld [vmem:[%s3 + $0xc] sm:$0xf]
  %v224 = vld [vmem:[%s3 + $0x10] sm:$0xf]
  %v225 = vld [vmem:[%s3 + $0x14] sm:$0xf]
  %v226 = vld [vmem:[%s3 + $0x18] sm:$0xf]
  %v227 = vld [vmem:[%s3 + $0x1c] sm:$0xf]
  %v228 = vld [vmem:[%s4] sm:$0x1]
  %v230 = vlaneseq
  %v231 = vshrl.u32 %v230, 7
  %v232 = vsub.s32 0, %v231
  %v233 = vrot.slane %v228, %v232
  %v243 = vunpack.c.l.b16 %v220
  %v244 = vunpack.c.l.b16 %v221
  %v245 = vunpack.c.l.b16 %v222
  %v246 = vunpack.c.l.b16 %v223
  %v247 = vunpack.c.l.b16 %v224
  %v248 = vunpack.c.l.b16 %v225
  %v249 = vunpack.c.l.b16 %v226
  %v250 = vunpack.c.l.b16 %v227
  %v251 = vpack.c.b16 %v244, %v243
  %v252 = vpack.c.b16 %v246, %v245
  %v253 = vpack.c.b16 %v248, %v247
  %v254 = vpack.c.b16 %v250, %v249
  %vm259 = vcmask 523264
  %v261 = vsel %vm259, %v212, 0
  %v264 = vsel %vm259, %v213, 0
  %v267 = vsel %vm259, %v214, 0
  %v270 = vsel %vm259, %v215, 0
  %v273 = vsel %vm259, %v216, 0
  %v276 = vsel %vm259, %v217, 0
  %v279 = vsel %vm259, %v218, 0
  %v282 = vsel %vm259, %v219, 0
  %284 = vmatprep.subr.bf16.mxu0 0
  %285 = vmatpush1.bf16.msra.mxu0 %v251
  %286 = vmatprep.subr.bf16.mxu0 0
  %287 = vmatpush1.bf16.msra.mxu0 %v252
  %288 = vmatprep.subr.bf16.mxu0 0
  %289 = vmatpush1.bf16.msra.mxu0 %v253
  %290 = vmatprep.subr.bf16.mxu0 0
  %291 = vmatpush1.bf16.msra.mxu0 %v254
  %292 = vmatprep.subr.bf16.mxu0 0
  %293 = vmatpush1.bf16.msra.mxu0 0
  %294 = vmatprep.subr.bf16.mxu0 0
  %295 = vmatpush1.bf16.msra.mxu0 0
  %296 = vmatprep.subr.bf16.mxu0 0
  %297 = vmatpush1.bf16.msra.mxu0 0
  %298 = vmatprep.subr.bf16.mxu0 0
  %299 = vmatpush1.bf16.msra.mxu0 0
  %300 = vmatprep.subr.bf16.mxu0 0
  %301 = vmatpush1.bf16.msra.mxu0 0
  %302 = vmatprep.subr.bf16.mxu0 0
  %303 = vmatpush1.bf16.msra.mxu0 0
  %304 = vmatprep.subr.bf16.mxu0 0
  %305 = vmatpush1.bf16.msra.mxu0 0
  %306 = vmatprep.subr.bf16.mxu0 0
  %307 = vmatpush1.bf16.msra.mxu0 0
  %308 = vmatprep.subr.bf16.mxu0 0
  %309 = vmatpush1.bf16.msra.mxu0 0
  %310 = vmatprep.subr.bf16.mxu0 0
  %311 = vmatpush1.bf16.msra.mxu0 0
  %312 = vmatprep.subr.bf16.mxu0 0
  %313 = vmatpush1.bf16.msra.mxu0 0
  %314 = vmatprep.subr.bf16.mxu0 0
  %315 = vmatpush1.bf16.msra.mxu0 0
  %316 = vmatprep.mubr.bf16.mxu0 0
  %317 = vmatmul.mubr.bf16.gmra.mrb[0].mxu0 %v261
  %v318 = vpop.f32.mrb[0].mxu0
  %v319 = vadd.f32 %v233, %v318
  %v320 = vpop.f32.mrb[0].mxu0
  %v321 = vpop.f32.mrb[0].mxu0
  %v322 = vadd.f32 %v233, %v321
  %v323 = vpop.f32.mrb[0].mxu0
  %324 = vmatprep.mubr.bf16.mxu0 0
  %325 = vmatmul.mubr.bf16.gmra.mrb[0].mxu0 %v264
  %v326 = vpop.f32.mrb[0].mxu0
  %v327 = vadd.f32 %v233, %v326
  %v328 = vpop.f32.mrb[0].mxu0
  %v329 = vpop.f32.mrb[0].mxu0
  %v330 = vadd.f32 %v233, %v329
  %v331 = vpop.f32.mrb[0].mxu0
  %332 = vmatprep.mubr.bf16.mxu0 0
  %333 = vmatmul.mubr.bf16.gmra.mrb[0].mxu0 %v267
  %v334 = vpop.f32.mrb[0].mxu0
  %v335 = vadd.f32 %v233, %v334
  %v336 = vpop.f32.mrb[0].mxu0
  %v337 = vpop.f32.mrb[0].mxu0
  %v338 = vadd.f32 %v233, %v337
  %v339 = vpop.f32.mrb[0].mxu0
  %340 = vmatprep.mubr.bf16.mxu0 0
  %341 = vmatmul.mubr.bf16.gmra.mrb[0].mxu0 %v270
  %v342 = vpop.f32.mrb[0].mxu0
  %v343 = vadd.f32 %v233, %v342
  %v344 = vpop.f32.mrb[0].mxu0
  %v345 = vpop.f32.mrb[0].mxu0
  %v346 = vadd.f32 %v233, %v345
  %v347 = vpop.f32.mrb[0].mxu0
  %348 = vmatprep.mubr.bf16.mxu0 0
  %349 = vmatmul.mubr.bf16.gmra.mrb[0].mxu0 %v273
  %v350 = vpop.f32.mrb[0].mxu0
  %v351 = vadd.f32 %v233, %v350
  %v352 = vpop.f32.mrb[0].mxu0
  %v353 = vpop.f32.mrb[0].mxu0
  %v354 = vadd.f32 %v233, %v353
  %v355 = vpop.f32.mrb[0].mxu0
  %356 = vmatprep.mubr.bf16.mxu0 0
  %357 = vmatmul.mubr.bf16.gmra.mrb[0].mxu0 %v276
  %v358 = vpop.f32.mrb[0].mxu0
  %v359 = vadd.f32 %v233, %v358
  %v360 = vpop.f32.mrb[0].mxu0
  %v361 = vpop.f32.mrb[0].mxu0
  %v362 = vadd.f32 %v233, %v361
  %v363 = vpop.f32.mrb[0].mxu0
  %364 = vmatprep.mubr.bf16.mxu0 0
  %365 = vmatmul.mubr.bf16.gmra.mrb[0].mxu0 %v279
  %v366 = vpop.f32.mrb[0].mxu0
  %v367 = vadd.f32 %v233, %v366
  %v368 = vpop.f32.mrb[0].mxu0
  %v369 = vpop.f32.mrb[0].mxu0
  %v370 = vadd.f32 %v233, %v369
  %v371 = vpop.f32.mrb[0].mxu0
  %372 = vmatprep.mubr.bf16.mxu0 0
  %373 = vmatmul.mubr.bf16.gmra.mrb[0].mxu0 %v282
  %v374 = vpop.f32.mrb[0].mxu0
  %v375 = vadd.f32 %v233, %v374
  %v376 = vpop.f32.mrb[0].mxu0
  %v377 = vpop.f32.mrb[0].mxu0
  %v378 = vadd.f32 %v233, %v377
  %v379 = vpop.f32.mrb[0].mxu0
  %380 = vdwg.mxu0
  %v381 = vmax.f32 %v319, 0.0
  %v382 = vmax.f32 %v322, 0.0
  %v383 = vmax.f32 %v327, 0.0
  %v384 = vmax.f32 %v330, 0.0
  %v385 = vmax.f32 %v335, 0.0
  %v386 = vmax.f32 %v338, 0.0
  %v387 = vmax.f32 %v343, 0.0
  %v388 = vmax.f32 %v346, 0.0
  %v389 = vmax.f32 %v351, 0.0
  %v390 = vmax.f32 %v354, 0.0
  %v391 = vmax.f32 %v359, 0.0
  %v392 = vmax.f32 %v362, 0.0
  %v393 = vmax.f32 %v367, 0.0
  %v394 = vmax.f32 %v370, 0.0
  %v395 = vmax.f32 %v375, 0.0
  %v396 = vmax.f32 %v378, 0.0
  %v397 = vpack.c.bf16 %v382, %v381
  %v398 = vpack.c.bf16 %v384, %v383
  %v399 = vpack.c.bf16 %v386, %v385
  %v400 = vpack.c.bf16 %v388, %v387
  %v401 = vpack.c.bf16 %v390, %v389
  %v402 = vpack.c.bf16 %v392, %v391
  %v403 = vpack.c.bf16 %v394, %v393
  %v404 = vpack.c.bf16 %v396, %v395
  %v405 = vld [vmem:[%s5] sm:$0xf]
  %v406 = vld [vmem:[%s5 + $0x4] sm:$0xf]
  %v407 = vld [vmem:[%s5 + $0x8] sm:$0xf]
  %v408 = vld [vmem:[%s5 + $0xc] sm:$0xf]
  %v409 = vld [vmem:[%s5 + $0x10] sm:$0xf]
  %v410 = vld [vmem:[%s5 + $0x14] sm:$0xf]
  %v411 = vld [vmem:[%s5 + $0x18] sm:$0xf]
  %v412 = vld [vmem:[%s5 + $0x1c] sm:$0xf]
  %v413 = vld [vmem:[%s5 + $0x20] sm:$0xf]
  %v414 = vld [vmem:[%s5 + $0x24] sm:$0xf]
  %v415 = vld [vmem:[%s5 + $0x28] sm:$0xf]
  %v416 = vld [vmem:[%s5 + $0x2c] sm:$0xf]
  %v417 = vld [vmem:[%s5 + $0x30] sm:$0xf]
  %v418 = vld [vmem:[%s5 + $0x34] sm:$0xf]
  %v419 = vld [vmem:[%s5 + $0x38] sm:$0xf]
  %v420 = vld [vmem:[%s5 + $0x3c] sm:$0xf]
  %v421 = vld [vmem:[%s6] sm:$0x1]
  %v423 = vlaneseq
  %v424 = vshrl.u32 %v423, 7
  %v425 = vsub.s32 0, %v424
  %v426 = vrot.slane %v421, %v425
  %v444 = vunpack.c.l.b16 %v405
  %v445 = vunpack.c.l.b16 %v406
  %v446 = vunpack.c.l.b16 %v407
  %v447 = vunpack.c.l.b16 %v408
  %v448 = vunpack.c.l.b16 %v409
  %v449 = vunpack.c.l.b16 %v410
  %v450 = vunpack.c.l.b16 %v411
  %v451 = vunpack.c.l.b16 %v412
  %v452 = vunpack.c.l.b16 %v413
  %v453 = vunpack.c.l.b16 %v414
  %v454 = vunpack.c.l.b16 %v415
  %v455 = vunpack.c.l.b16 %v416
  %v456 = vunpack.c.l.b16 %v417
  %v457 = vunpack.c.l.b16 %v418
  %v458 = vunpack.c.l.b16 %v419
  %v459 = vunpack.c.l.b16 %v420
  %v460 = vpack.c.b16 %v445, %v444
  %v461 = vpack.c.b16 %v447, %v446
  %v462 = vpack.c.b16 %v449, %v448
  %v463 = vpack.c.b16 %v451, %v450
  %v464 = vpack.c.b16 %v453, %v452
  %v465 = vpack.c.b16 %v455, %v454
  %v466 = vpack.c.b16 %v457, %v456
  %v467 = vpack.c.b16 %v459, %v458
  %476 = vmatprep.subr.bf16.mxu0 0
  %477 = vmatpush1.bf16.msra.mxu0 %v460
  %478 = vmatprep.subr.bf16.mxu0 0
  %479 = vmatpush1.bf16.msra.mxu0 %v461
  %480 = vmatprep.subr.bf16.mxu0 0
  %481 = vmatpush1.bf16.msra.mxu0 %v462
  %482 = vmatprep.subr.bf16.mxu0 0
  %483 = vmatpush1.bf16.msra.mxu0 %v463
  %484 = vmatprep.subr.bf16.mxu0 0
  %485 = vmatpush1.bf16.msra.mxu0 %v464
  %486 = vmatprep.subr.bf16.mxu0 0
  %487 = vmatpush1.bf16.msra.mxu0 %v465
  %488 = vmatprep.subr.bf16.mxu0 0
  %489 = vmatpush1.bf16.msra.mxu0 %v466
  %490 = vmatprep.subr.bf16.mxu0 0
  %491 = vmatpush1.bf16.msra.mxu0 %v467
  %492 = vmatprep.subr.bf16.mxu0 0
  %493 = vmatpush1.bf16.msra.mxu0 0
  %494 = vmatprep.subr.bf16.mxu0 0
  %495 = vmatpush1.bf16.msra.mxu0 0
  %496 = vmatprep.subr.bf16.mxu0 0
  %497 = vmatpush1.bf16.msra.mxu0 0
  %498 = vmatprep.subr.bf16.mxu0 0
  %499 = vmatpush1.bf16.msra.mxu0 0
  %500 = vmatprep.subr.bf16.mxu0 0
  %501 = vmatpush1.bf16.msra.mxu0 0
  %502 = vmatprep.subr.bf16.mxu0 0
  %503 = vmatpush1.bf16.msra.mxu0 0
  %504 = vmatprep.subr.bf16.mxu0 0
  %505 = vmatpush1.bf16.msra.mxu0 0
  %506 = vmatprep.subr.bf16.mxu0 0
  %507 = vmatpush1.bf16.msra.mxu0 0
  %508 = vmatprep.mubr.bf16.mxu0 0
  %509 = vmatmul.mubr.bf16.gmra.mrb[0].mxu0 %v397
  %v510 = vpop.f32.mrb[0].mxu0
  %v511 = vadd.f32 %v426, %v510
  %v512 = vpop.f32.mrb[0].mxu0
  %v513 = vpop.f32.mrb[0].mxu0
  %v514 = vadd.f32 %v426, %v513
  %v515 = vpop.f32.mrb[0].mxu0
  %516 = vmatprep.mubr.bf16.mxu0 0
  %517 = vmatmul.mubr.bf16.gmra.mrb[0].mxu0 %v398
  %v518 = vpop.f32.mrb[0].mxu0
  %v519 = vadd.f32 %v426, %v518
  %v520 = vpop.f32.mrb[0].mxu0
  %v521 = vpop.f32.mrb[0].mxu0
  %v522 = vadd.f32 %v426, %v521
  %v523 = vpop.f32.mrb[0].mxu0
  %524 = vmatprep.mubr.bf16.mxu0 0
  %525 = vmatmul.mubr.bf16.gmra.mrb[0].mxu0 %v399
  %v526 = vpop.f32.mrb[0].mxu0
  %v527 = vadd.f32 %v426, %v526
  %v528 = vpop.f32.mrb[0].mxu0
  %v529 = vpop.f32.mrb[0].mxu0
  %v530 = vadd.f32 %v426, %v529
  %v531 = vpop.f32.mrb[0].mxu0
  %532 = vmatprep.mubr.bf16.mxu0 0
  %533 = vmatmul.mubr.bf16.gmra.mrb[0].mxu0 %v400
  %v534 = vpop.f32.mrb[0].mxu0
  %v535 = vadd.f32 %v426, %v534
  %v536 = vpop.f32.mrb[0].mxu0
  %v537 = vpop.f32.mrb[0].mxu0
  %v538 = vadd.f32 %v426, %v537
  %v539 = vpop.f32.mrb[0].mxu0
  %540 = vmatprep.mubr.bf16.mxu0 0
  %541 = vmatmul.mubr.bf16.gmra.mrb[0].mxu0 %v401
  %v542 = vpop.f32.mrb[0].mxu0
  %v543 = vadd.f32 %v426, %v542
  %v544 = vpop.f32.mrb[0].mxu0
  %v545 = vpop.f32.mrb[0].mxu0
  %v546 = vadd.f32 %v426, %v545
  %v547 = vpop.f32.mrb[0].mxu0
  %548 = vmatprep.mubr.bf16.mxu0 0
  %549 = vmatmul.mubr.bf16.gmra.mrb[0].mxu0 %v402
  %v550 = vpop.f32.mrb[0].mxu0
  %v551 = vadd.f32 %v426, %v550
  %v552 = vpop.f32.mrb[0].mxu0
  %v553 = vpop.f32.mrb[0].mxu0
  %v554 = vadd.f32 %v426, %v553
  %v555 = vpop.f32.mrb[0].mxu0
  %556 = vmatprep.mubr.bf16.mxu0 0
  %557 = vmatmul.mubr.bf16.gmra.mrb[0].mxu0 %v403
  %v558 = vpop.f32.mrb[0].mxu0
  %v559 = vadd.f32 %v426, %v558
  %v560 = vpop.f32.mrb[0].mxu0
  %v561 = vpop.f32.mrb[0].mxu0
  %v562 = vadd.f32 %v426, %v561
  %v563 = vpop.f32.mrb[0].mxu0
  %564 = vmatprep.mubr.bf16.mxu0 0
  %565 = vmatmul.mubr.bf16.gmra.mrb[0].mxu0 %v404
  %v566 = vpop.f32.mrb[0].mxu0
  %v567 = vadd.f32 %v426, %v566
  %v568 = vpop.f32.mrb[0].mxu0
  %v569 = vpop.f32.mrb[0].mxu0
  %v570 = vadd.f32 %v426, %v569
  %v571 = vpop.f32.mrb[0].mxu0
  %572 = vdwg.mxu0
  %v573 = vmax.f32 %v511, 0.0
  %v574 = vmax.f32 %v514, 0.0
  %v575 = vmax.f32 %v519, 0.0
  %v576 = vmax.f32 %v522, 0.0
  %v577 = vmax.f32 %v527, 0.0
  %v578 = vmax.f32 %v530, 0.0
  %v579 = vmax.f32 %v535, 0.0
  %v580 = vmax.f32 %v538, 0.0
  %v581 = vmax.f32 %v543, 0.0
  %v582 = vmax.f32 %v546, 0.0
  %v583 = vmax.f32 %v551, 0.0
  %v584 = vmax.f32 %v554, 0.0
  %v585 = vmax.f32 %v559, 0.0
  %v586 = vmax.f32 %v562, 0.0
  %v587 = vmax.f32 %v567, 0.0
  %v588 = vmax.f32 %v570, 0.0
  %v589 = vld [vmem:[%s7] sm:$0x1]
  %v591 = vlaneseq
  %v592 = vshrl.u32 %v591, 7
  %v593 = vsub.s32 0, %v592
  %v594 = vrot.slane %v589, %v593
  %v596 = vmul.f32 %v573, %v594
  %v597 = vmul.f32 %v574, %v594
  %v598 = vmul.f32 %v575, %v594
  %v599 = vmul.f32 %v576, %v594
  %v600 = vmul.f32 %v577, %v594
  %v601 = vmul.f32 %v578, %v594
  %v602 = vmul.f32 %v579, %v594
  %v603 = vmul.f32 %v580, %v594
  %v604 = vmul.f32 %v581, %v594
  %v605 = vmul.f32 %v582, %v594
  %v606 = vmul.f32 %v583, %v594
  %v607 = vmul.f32 %v584, %v594
  %v608 = vmul.f32 %v585, %v594
  %v609 = vmul.f32 %v586, %v594
  %v610 = vmul.f32 %v587, %v594
  %v611 = vmul.f32 %v588, %v594
  %612 = vadd.xlane.f32.xlu0 %v596
  %v613 = vpop.xlane.xlu0 %612
  %614 = vadd.xlane.f32.xlu0 %v597
  %v615 = vpop.xlane.xlu0 %614
  %616 = vadd.xlane.f32.xlu0 %v598
  %v617 = vpop.xlane.xlu0 %616
  %618 = vadd.xlane.f32.xlu0 %v599
  %v619 = vpop.xlane.xlu0 %618
  %620 = vadd.xlane.f32.xlu0 %v600
  %v621 = vpop.xlane.xlu0 %620
  %622 = vadd.xlane.f32.xlu0 %v601
  %v623 = vpop.xlane.xlu0 %622
  %624 = vadd.xlane.f32.xlu0 %v602
  %v625 = vpop.xlane.xlu0 %624
  %626 = vadd.xlane.f32.xlu0 %v603
  %v627 = vpop.xlane.xlu0 %626
  %628 = vadd.xlane.f32.xlu0 %v604
  %v629 = vpop.xlane.xlu0 %628
  %630 = vadd.xlane.f32.xlu0 %v605
  %v631 = vpop.xlane.xlu0 %630
  %632 = vadd.xlane.f32.xlu0 %v606
  %v633 = vpop.xlane.xlu0 %632
  %634 = vadd.xlane.f32.xlu0 %v607
  %v635 = vpop.xlane.xlu0 %634
  %636 = vadd.xlane.f32.xlu0 %v608
  %v637 = vpop.xlane.xlu0 %636
  %638 = vadd.xlane.f32.xlu0 %v609
  %v639 = vpop.xlane.xlu0 %638
  %640 = vadd.xlane.f32.xlu0 %v610
  %v641 = vpop.xlane.xlu0 %640
  %642 = vadd.xlane.f32.xlu0 %v611
  %v643 = vpop.xlane.xlu0 %642
  %v644 = vld [vmem:[#allocation2] sm:$0x1]
  %v646 = vlaneseq
  %v647 = vshrl.u32 %v646, 7
  %v648 = vsub.s32 0, %v647
  %v649 = vrot.slane %v644, %v648
  %v651 = vadd.f32 %v613, %v649
  %v652 = vadd.f32 %v615, %v649
  %v653 = vadd.f32 %v617, %v649
  %v654 = vadd.f32 %v619, %v649
  %v655 = vadd.f32 %v621, %v649
  %v656 = vadd.f32 %v623, %v649
  %v657 = vadd.f32 %v625, %v649
  %v658 = vadd.f32 %v627, %v649
  %v659 = vadd.f32 %v629, %v649
  %v660 = vadd.f32 %v631, %v649
  %v661 = vadd.f32 %v633, %v649
  %v662 = vadd.f32 %v635, %v649
  %v663 = vadd.f32 %v637, %v649
  %v664 = vadd.f32 %v639, %v649
  %v665 = vadd.f32 %v641, %v649
  %v666 = vadd.f32 %v643, %v649
  %v667 = vsub.f32 0.0, %v651
  %v668 = vsub.f32 0.0, %v652
  %v669 = vsub.f32 0.0, %v653
  %v670 = vsub.f32 0.0, %v654
  %v671 = vsub.f32 0.0, %v655
  %v672 = vsub.f32 0.0, %v656
  %v673 = vsub.f32 0.0, %v657
  %v674 = vsub.f32 0.0, %v658
  %v675 = vsub.f32 0.0, %v659
  %v676 = vsub.f32 0.0, %v660
  %v677 = vsub.f32 0.0, %v661
  %v678 = vsub.f32 0.0, %v662
  %v679 = vsub.f32 0.0, %v663
  %v680 = vsub.f32 0.0, %v664
  %v681 = vsub.f32 0.0, %v665
  %v682 = vsub.f32 0.0, %v666
  %v683 = vmul.f32 %v667, 1.442695
  %v684 = vpow.pop %v683
  %v685 = vmul.f32 %v668, 1.442695
  %v686 = vpow.pop %v685
  %v687 = vmul.f32 %v669, 1.442695
  %v688 = vpow.pop %v687
  %v689 = vmul.f32 %v670, 1.442695
  %v690 = vpow.pop %v689
  %v691 = vmul.f32 %v671, 1.442695
  %v692 = vpow.pop %v691
  %v693 = vmul.f32 %v672, 1.442695
  %v694 = vpow.pop %v693
  %v695 = vmul.f32 %v673, 1.442695
  %v696 = vpow.pop %v695
  %v697 = vmul.f32 %v674, 1.442695
  %v698 = vpow.pop %v697
  %v699 = vmul.f32 %v675, 1.442695
  %v700 = vpow.pop %v699
  %v701 = vmul.f32 %v676, 1.442695
  %v702 = vpow.pop %v701
  %v703 = vmul.f32 %v677, 1.442695
  %v704 = vpow.pop %v703
  %v705 = vmul.f32 %v678, 1.442695
  %v706 = vpow.pop %v705
  %v707 = vmul.f32 %v679, 1.442695
  %v708 = vpow.pop %v707
  %v709 = vmul.f32 %v680, 1.442695
  %v710 = vpow.pop %v709
  %v711 = vmul.f32 %v681, 1.442695
  %v712 = vpow.pop %v711
  %v713 = vmul.f32 %v682, 1.442695
  %v714 = vpow.pop %v713
  %v715 = vadd.f32 %v684, 1.0
  %v716 = vadd.f32 %v686, 1.0
  %v717 = vadd.f32 %v688, 1.0
  %v718 = vadd.f32 %v690, 1.0
  %v719 = vadd.f32 %v692, 1.0
  %v720 = vadd.f32 %v694, 1.0
  %v721 = vadd.f32 %v696, 1.0
  %v722 = vadd.f32 %v698, 1.0
  %v723 = vadd.f32 %v700, 1.0
  %v724 = vadd.f32 %v702, 1.0
  %v725 = vadd.f32 %v704, 1.0
  %v726 = vadd.f32 %v706, 1.0
  %v727 = vadd.f32 %v708, 1.0
  %v728 = vadd.f32 %v710, 1.0
  %v729 = vadd.f32 %v712, 1.0
  %v730 = vadd.f32 %v714, 1.0
  %v731 = vrcp.pop %v715
  %v732 = vmul.f32 1.0, %v731
  %v733 = vrcp.pop %v716
  %v734 = vmul.f32 1.0, %v733
  %v735 = vrcp.pop %v717
  %v736 = vmul.f32 1.0, %v735
  %v737 = vrcp.pop %v718
  %v738 = vmul.f32 1.0, %v737
  %v739 = vrcp.pop %v719
  %v740 = vmul.f32 1.0, %v739
  %v741 = vrcp.pop %v720
  %v742 = vmul.f32 1.0, %v741
  %v743 = vrcp.pop %v721
  %v744 = vmul.f32 1.0, %v743
  %v745 = vrcp.pop %v722
  %v746 = vmul.f32 1.0, %v745
  %v747 = vrcp.pop %v723
  %v748 = vmul.f32 1.0, %v747
  %v749 = vrcp.pop %v724
  %v750 = vmul.f32 1.0, %v749
  %v751 = vrcp.pop %v725
  %v752 = vmul.f32 1.0, %v751
  %v753 = vrcp.pop %v726
  %v754 = vmul.f32 1.0, %v753
  %v755 = vrcp.pop %v727
  %v756 = vmul.f32 1.0, %v755
  %v757 = vrcp.pop %v728
  %v758 = vmul.f32 1.0, %v757
  %v759 = vrcp.pop %v729
  %v760 = vmul.f32 1.0, %v759
  %v761 = vrcp.pop %v730
  %v762 = vmul.f32 1.0, %v761
  %vm763 = vcmask 7168
  %764 = vst.msk [vmem:[%s9] sm:$0xff] %vm763, %v732
  %765 = vst.msk [vmem:[%s9 + $0x8] sm:$0xff] %vm763, %v734
  %766 = vst.msk [vmem:[%s9 + $0x10] sm:$0xff] %vm763, %v736
  %767 = vst.msk [vmem:[%s9 + $0x18] sm:$0xff] %vm763, %v738
  %768 = vst.msk [vmem:[%s9 + $0x20] sm:$0xff] %vm763, %v740
  %769 = vst.msk [vmem:[%s9 + $0x28] sm:$0xff] %vm763, %v742
  %770 = vst.msk [vmem:[%s9 + $0x30] sm:$0xff] %vm763, %v744
  %771 = vst.msk [vmem:[%s9 + $0x38] sm:$0xff] %vm763, %v746
  %772 = vst.msk [vmem:[%s9 + $0x40] sm:$0xff] %vm763, %v748
  %773 = vst.msk [vmem:[%s9 + $0x48] sm:$0xff] %vm763, %v750
  %774 = vst.msk [vmem:[%s9 + $0x50] sm:$0xff] %vm763, %v752
  %775 = vst.msk [vmem:[%s9 + $0x58] sm:$0xff] %vm763, %v754
  %776 = vst.msk [vmem:[%s9 + $0x60] sm:$0xff] %vm763, %v756
  %777 = vst.msk [vmem:[%s9 + $0x68] sm:$0xff] %vm763, %v758
  %778 = vst.msk [vmem:[%s9 + $0x70] sm:$0xff] %vm763, %v760
  %779 = vst.msk [vmem:[%s9 + $0x78] sm:$0xff] %vm763, %v762
  // Predicated region
  $region38: #{tpu_custom_call.1} parent=0 // pred_check
    _
  $region39: #{tpu_custom_call.1} parent=0 // pred_check_branch
    %781 = sbr.rel (0) target = $region41
  $region40: #{tpu_custom_call.1} parent=0 // pred_region
    _
  $region41: #{tpu_custom_call.1} parent=0 // pred_fallthru
    _
  // Predicated region
  $region42: #{tpu_custom_call.1} parent=0 // pred_check
    _
  $region43: #{tpu_custom_call.1} parent=0 // pred_check_branch
    %783 = sbr.rel (0) target = $region45
  $region44: #{tpu_custom_call.1} parent=0 // pred_region
    _
  $region45: #{tpu_custom_call.1} parent=0 // pred_fallthru
    _

</llo_original>
